<compile_context>
chip_gen: v5e
topology: v5e:2x2
jax: 0.10.0
libtpu: 0.0.40
codegen_flags: <defaults>
</compile_context>

<pallas_src>
import math
import functools

import jax
import jax.numpy as jnp
from jax.experimental import pallas as pl
from jax.experimental.pallas import tpu as pltpu


def _block_kernel(x_ref, ln1g_ref, ln1b_ref, convw_ref, convb_ref, ws6_ref,
                  dtb_ref, alogT_ref, dskip_ref, ln2g_ref, ln2b_ref,
                  w1_ref, b1_ref, w2_ref, b2_ref,
                  o_ref,
                  up_sc, dlt_sc, du_sc, b_sc, c_sc, y_sc,
                  *, d_state, d_conv):
    x = x_ref[0].astype(jnp.float32)                      # (L, C)
    L, C = x.shape
    K = d_conv

    def layer_norm(v, g, b):
        mu = jnp.mean(v, axis=-1, keepdims=True)
        d = v - mu
        var = jnp.mean(d * d, axis=-1, keepdims=True)
        return d * jax.lax.rsqrt(var + 1e-5) * g + b

    # ---------------- S6 branch: y = S6(LayerNorm(x)) ----------------
    h = layer_norm(x, ln1g_ref[...], ln1b_ref[...])       # (L, C)

    # Depthwise causal conv1d (+bias), then SiLU. Left-pad K-1 zero rows in VMEM
    # scratch and accumulate K shifted row-blocks (K is tiny and static).
    if K > 1:
        up_sc[0:K - 1, :] = jnp.zeros((K - 1, C), jnp.float32)
    up_sc[K - 1:K - 1 + L, :] = h
    xc = jnp.broadcast_to(convb_ref[...], (L, C))
    for k in range(K):
        xc = xc + convw_ref[k:k + 1, :] * up_sc[k:k + L, :]
    u = xc * (1.0 / (1.0 + jnp.exp(-xc)))                 # SiLU, (L, C)

    # Fused projection: one matmul produces [dt | B | C].
    proj = jnp.dot(u, ws6_ref[...], preferred_element_type=jnp.float32)  # (L, C + 2n)
    dt_z = proj[:, 0:C] + dtb_ref[...]                    # (L, C)
    Bm = proj[:, C:C + d_state]                           # (L, d_state)
    Cm = proj[:, C + d_state:C + 2 * d_state]             # (L, d_state)

    # delta = softplus(dt + dt_bias)   (numerically stable form)
    delta = jnp.maximum(dt_z, 0.0) + jnp.log(1.0 + jnp.exp(-jnp.abs(dt_z)))
    A_T = -jnp.exp(alogT_ref[...])                        # (d_state, C)

    # Stage per-timestep tensors in VMEM scratch for dynamic row access in the scan.
    dlt_sc[...] = delta
    du_sc[...] = delta * u
    b_sc[...] = Bm
    c_sc[...] = Cm

    eye = (jax.lax.broadcasted_iota(jnp.int32, (d_state, d_state), 0) ==
           jax.lax.broadcasted_iota(jnp.int32, (d_state, d_state), 1))

    def row_to_col(row):
        # (1, d_state) -> (d_state, 1) via broadcast + masked lane reduce
        # (avoids relying on sub-tile transpose lowering inside the loop).
        m = jnp.broadcast_to(row, (d_state, d_state))
        return jnp.sum(jnp.where(eye, m, 0.0), axis=1, keepdims=True)

    def step(t, state):                                   # state: (d_state, C)
        dlt_t = dlt_sc[pl.ds(t, 1), :]                    # (1, C)
        du_t = du_sc[pl.ds(t, 1), :]                      # (1, C)
        b_col = row_to_col(b_sc[pl.ds(t, 1), :])          # (d_state, 1)
        c_col = row_to_col(c_sc[pl.ds(t, 1), :])          # (d_state, 1)

        dA = jnp.exp(jnp.broadcast_to(dlt_t, (d_state, C)) * A_T)
        dBu = (jnp.broadcast_to(b_col, (d_state, C)) *
               jnp.broadcast_to(du_t, (d_state, C)))
        state = dA * state + dBu
        y_t = jnp.sum(jnp.broadcast_to(c_col, (d_state, C)) * state,
                      axis=0, keepdims=True)              # (1, C)
        y_sc[pl.ds(t, 1), :] = y_t
        return state

    jax.lax.fori_loop(0, L, step, jnp.zeros((d_state, C), jnp.float32))

    y = y_sc[...] + u * dskip_ref[...]                    # D skip connection
    x1 = x + y                                            # residual 1

    # ---------------- MLP branch ----------------
    h2 = layer_norm(x1, ln2g_ref[...], ln2b_ref[...])
    m1 = jnp.dot(h2, w1_ref[...], preferred_element_type=jnp.float32) + b1_ref[...]
    # TODO(synk): torch F.gelu default is the exact erf form; tanh approximation is
    # used here since lax.erf has no guaranteed Mosaic lowering (max abs dev ~3e-4).
    g = 0.5 * m1 * (1.0 + jnp.tanh(0.7978845608028654 * (m1 + 0.044715 * m1 * m1 * m1)))
    m2 = jnp.dot(g, w2_ref[...], preferred_element_type=jnp.float32) + b2_ref[...]
    # resid_pdrop dropout is identity in eval mode.
    o_ref[0] = (x1 + m2).astype(o_ref.dtype)


def block_forward(x, params, *, d_state, d_conv, dt_rank):
    """x: (B, L, C) float32.  params: dict in torch layouts (see __main__)."""
    B, L, C = x.shape
    f32 = jnp.float32

    # ---- prepare kernel operands (pre-transposed / fused weights) ----
    xproj_w = params["xproj_w"].astype(f32)               # (dt_rank + 2n, C)
    w_dt_in = xproj_w[:dt_rank, :].T                      # (C, dt_rank)
    w_b_in = xproj_w[dt_rank:dt_rank + d_state, :].T      # (C, d_state)
    w_c_in = xproj_w[dt_rank + d_state:, :].T             # (C, d_state)
    w_dt_fused = w_dt_in @ params["dtproj_w"].astype(f32).T       # (C, C)
    w_s6 = jnp.concatenate([w_dt_fused, w_b_in, w_c_in], axis=1)  # (C, C + 2n)

    row = lambda v: v.reshape(1, -1).astype(f32)
    operands = [
        x,
        row(params["ln1_w"]), row(params["ln1_b"]),
        params["conv_w"].astype(f32).T,                   # (d_conv, C)
        row(params["conv_b"]),
        w_s6,
        row(params["dtproj_b"]),
        params["A_log"].astype(f32).T,                    # (d_state, C)
        row(params["D"]),
        row(params["ln2_w"]), row(params["ln2_b"]),
        params["mlp_w1"].astype(f32).T,                   # (C, 4C)
        row(params["mlp_b1"]),
        params["mlp_w2"].astype(f32).T,                   # (4C, C)
        row(params["mlp_b2"]),
    ]

    def const(shape):
        return pl.BlockSpec(shape, lambda b, _s=shape: (0,) * len(_s))

    in_specs = [
        pl.BlockSpec((1, L, C), lambda b: (b, 0, 0)),     # x
        const((1, C)), const((1, C)),                     # ln1
        const((d_conv, C)), const((1, C)),                # conv
        const((C, C + 2 * d_state)),                      # fused dt|B|C projection
        const((1, C)),                                    # dt bias
        const((d_state, C)),                              # A_log^T
        const((1, C)),                                    # D
        const((1, C)), const((1, C)),                     # ln2
        const((C, 4 * C)), const((1, 4 * C)),             # mlp fc1
        const((4 * C, C)), const((1, C)),                 # mlp fc2
    ]

    kernel = functools.partial(_block_kernel, d_state=d_state, d_conv=d_conv)

    return pl.pallas_call(
        kernel,
        out_shape=jax.ShapeDtypeStruct((B, L, C), x.dtype),
        grid_spec=pltpu.PrefetchScalarGridSpec(
            num_scalar_prefetch=0,
            grid=(B,),
            in_specs=in_specs,
            out_specs=pl.BlockSpec((1, L, C), lambda b: (b, 0, 0)),
            scratch_shapes=[
                pltpu.VMEM((d_conv - 1 + L, C), f32),     # left-padded conv input
                pltpu.VMEM((L, C), f32),                  # delta
                pltpu.VMEM((L, C), f32),                  # delta * u
                pltpu.VMEM((L, d_state), f32),            # B(t)
                pltpu.VMEM((L, d_state), f32),            # C(t)
                pltpu.VMEM((L, C), f32),                  # scan output rows
            ],
        ),
        compiler_params=pltpu.CompilerParams(
            dimension_semantics=("parallel",)),
    )(*operands)


def _reference(x, params, *, d_state, d_conv, dt_rank):
    """Pure-JAX reference mirroring the PyTorch forward (eval mode, torch op order)."""
    B, L, C = x.shape

    def ln(v, g, b, eps=1e-5):
        mu = v.mean(-1, keepdims=True)
        var = ((v - mu) ** 2).mean(-1, keepdims=True)
        return (v - mu) / jnp.sqrt(var + eps) * g + b

    h = ln(x, params["ln1_w"], params["ln1_b"])
    hT = jnp.transpose(h, (0, 2, 1))                              # (B, C, L)
    pad = jnp.pad(hT, ((0, 0), (0, 0), (d_conv - 1, 0)))
    conv = jnp.zeros_like(hT) + params["conv_b"][None, :, None]
    for k in range(d_conv):
        conv = conv + params["conv_w"][None, :, k, None] * pad[:, :, k:k + L]
    u = jax.nn.silu(conv)                                         # (B, C, L)

    x_dbl = jnp.einsum("bdl,ed->ble", u, params["xproj_w"])
    dt_raw = x_dbl[..., :dt_rank]
    Bm = x_dbl[..., dt_rank:dt_rank + d_state]
    Cm = x_dbl[..., dt_rank + d_state:]
    dt = jnp.einsum("blr,dr->bld", dt_raw, params["dtproj_w"])
    delta = jax.nn.softplus(dt + params["dtproj_b"])
    A = -jnp.exp(params["A_log"])                                 # (C, d_state)
    uT = jnp.transpose(u, (0, 2, 1))                              # (B, L, C)

    dA = jnp.exp(jnp.einsum("bld,dn->bldn", delta, A))
    dBu = jnp.einsum("bld,bln->bldn", delta * uT, Bm)

    def step(state, inp):
        dA_t, dBu_t, c_t = inp
        state = dA_t * state + dBu_t                              # (B, C, d_state)
        return state, jnp.einsum("bdn,bn->bd", state, c_t)

    state0 = jnp.zeros((B, C, d_state), jnp.float32)
    _, ys = jax.lax.scan(step, state0,
                         (jnp.moveaxis(dA, 1, 0), jnp.moveaxis(dBu, 1, 0),
                          jnp.moveaxis(Cm, 1, 0)))
    y = jnp.moveaxis(ys, 0, 1) + uT * params["D"]
    x1 = x + y

    h2 = ln(x1, params["ln2_w"], params["ln2_b"])
    m = jnp.dot(h2, params["mlp_w1"].T) + params["mlp_b1"]
    m = jax.nn.gelu(m, approximate=True)    # kernel uses the same tanh approximation
    m = jnp.dot(m, params["mlp_w2"].T) + params["mlp_b2"]
    return x1 + m


if __name__ == "__main__":
    # Small config consistent with the module: n_embd=32, d_state=16, d_conv=4, expand=2.
    B, L, C = 2, 8, 32
    d_state, d_conv, expand = 16, 4, 2
    d_model = C // expand
    dt_rank = max(1, math.ceil(d_model / 16))

    key = jax.random.PRNGKey(0)
    ks = jax.random.split(key, 16)

    # dt_proj.bias init as in the module: inv_dt = dt + log(-expm1(-dt)).
    dt0 = jnp.exp(jax.random.uniform(ks[0], (C,)) * (math.log(0.1) - math.log(1e-3))
                  + math.log(1e-3))
    dt0 = jnp.maximum(dt0, 1e-4)
    inv_dt = dt0 + jnp.log(-jnp.expm1(-dt0))

    params = {
        "ln1_w": 1.0 + 0.1 * jax.random.normal(ks[1], (C,)),
        "ln1_b": 0.1 * jax.random.normal(ks[2], (C,)),
        "conv_w": 0.3 * jax.random.normal(ks[3], (C, d_conv)),        # conv1d.weight[:, 0, :]
        "conv_b": 0.1 * jax.random.normal(ks[4], (C,)),
        "xproj_w": 0.1 * jax.random.normal(ks[5], (dt_rank + 2 * d_state, C)),
        "dtproj_w": 0.1 * jax.random.normal(ks[6], (C, dt_rank)),
        "dtproj_b": inv_dt,
        "A_log": jnp.log(jnp.broadcast_to(
            jnp.arange(1, d_state + 1, dtype=jnp.float32), (C, d_state))),
        "D": jnp.ones((C,), jnp.float32),
        "ln2_w": 1.0 + 0.1 * jax.random.normal(ks[7], (C,)),
        "ln2_b": 0.1 * jax.random.normal(ks[8], (C,)),
        "mlp_w1": 0.1 * jax.random.normal(ks[9], (4 * C, C)),
        "mlp_b1": 0.05 * jax.random.normal(ks[10], (4 * C,)),
        "mlp_w2": 0.1 * jax.random.normal(ks[11], (C, 4 * C)),
        "mlp_b2": 0.05 * jax.random.normal(ks[12], (C,)),
    }
    x = jax.random.normal(ks[13], (B, L, C), dtype=jnp.float32)

    out = block_forward(x, params, d_state=d_state, d_conv=d_conv, dt_rank=dt_rank)
    out = jax.block_until_ready(out)

    ref = _reference(x, params, d_state=d_state, d_conv=d_conv, dt_rank=dt_rank)
    assert out.shape == (B, L, C)
    err = float(jnp.max(jnp.abs(out - ref)))
    assert jnp.allclose(out, ref, atol=1e-4, rtol=1e-4), f"mismatch vs reference, max abs err {err}"

    print("KERNEL_OK")
</pallas_src>

<mosaic_0001>
module attributes {stable_mosaic.version = 11 : i64} {
  func.func @_block_kernel(%arg0: i32, %arg1: memref<1x8x32xf32, #tpu.memory_space<vmem>>, %arg2: memref<1x32xf32, #tpu.memory_space<vmem>>, %arg3: memref<1x32xf32, #tpu.memory_space<vmem>>, %arg4: memref<4x32xf32, #tpu.memory_space<vmem>>, %arg5: memref<1x32xf32, #tpu.memory_space<vmem>>, %arg6: memref<32x64xf32, #tpu.memory_space<vmem>>, %arg7: memref<1x32xf32, #tpu.memory_space<vmem>>, %arg8: memref<16x32xf32, #tpu.memory_space<vmem>>, %arg9: memref<1x32xf32, #tpu.memory_space<vmem>>, %arg10: memref<1x32xf32, #tpu.memory_space<vmem>>, %arg11: memref<1x32xf32, #tpu.memory_space<vmem>>, %arg12: memref<32x128xf32, #tpu.memory_space<vmem>>, %arg13: memref<1x128xf32, #tpu.memory_space<vmem>>, %arg14: memref<128x32xf32, #tpu.memory_space<vmem>>, %arg15: memref<1x32xf32, #tpu.memory_space<vmem>>, %arg16: memref<1x8x32xf32, #tpu.memory_space<vmem>>, %arg17: memref<11x32xf32, #tpu.memory_space<vmem>>, %arg18: memref<8x32xf32, #tpu.memory_space<vmem>>, %arg19: memref<8x32xf32, #tpu.memory_space<vmem>>, %arg20: memref<8x16xf32, #tpu.memory_space<vmem>>, %arg21: memref<8x16xf32, #tpu.memory_space<vmem>>, %arg22: memref<8x32xf32, #tpu.memory_space<vmem>>) attributes {dimension_semantics = [#tpu.dimension_semantics<parallel>], iteration_bounds = array<i64: 2>, scalar_prefetch = 0 : i64, scratch_operands = 6 : i64, tpu.core_type = #tpu.core_type<tc>, window_params = [{transform_indices = @transform_0, window_bounds = array<i64: 1, 8, 32>}, {pipeline_mode = #tpu.pipeline_mode<synchronous>, transform_indices = @transform_1, window_bounds = array<i64: 1, 32>}, {pipeline_mode = #tpu.pipeline_mode<synchronous>, transform_indices = @transform_2, window_bounds = array<i64: 1, 32>}, {pipeline_mode = #tpu.pipeline_mode<synchronous>, transform_indices = @transform_3, window_bounds = array<i64: 4, 32>}, {pipeline_mode = #tpu.pipeline_mode<synchronous>, transform_indices = @transform_4, window_bounds = array<i64: 1, 32>}, {pipeline_mode = #tpu.pipeline_mode<synchronous>, transform_indices = @transform_5, window_bounds = array<i64: 32, 64>}, {pipeline_mode = #tpu.pipeline_mode<synchronous>, transform_indices = @transform_6, window_bounds = array<i64: 1, 32>}, {pipeline_mode = #tpu.pipeline_mode<synchronous>, transform_indices = @transform_7, window_bounds = array<i64: 16, 32>}, {pipeline_mode = #tpu.pipeline_mode<synchronous>, transform_indices = @transform_8, window_bounds = array<i64: 1, 32>}, {pipeline_mode = #tpu.pipeline_mode<synchronous>, transform_indices = @transform_9, window_bounds = array<i64: 1, 32>}, {pipeline_mode = #tpu.pipeline_mode<synchronous>, transform_indices = @transform_10, window_bounds = array<i64: 1, 32>}, {pipeline_mode = #tpu.pipeline_mode<synchronous>, transform_indices = @transform_11, window_bounds = array<i64: 32, 128>}, {pipeline_mode = #tpu.pipeline_mode<synchronous>, transform_indices = @transform_12, window_bounds = array<i64: 1, 128>}, {pipeline_mode = #tpu.pipeline_mode<synchronous>, transform_indices = @transform_13, window_bounds = array<i64: 128, 32>}, {pipeline_mode = #tpu.pipeline_mode<synchronous>, transform_indices = @transform_14, window_bounds = array<i64: 1, 32>}, {transform_indices = @transform_15, window_bounds = array<i64: 1, 8, 32>}]} {
    %c0 = arith.constant 0 : index
    %c0_0 = arith.constant 0 : index
    %c0_1 = arith.constant 0 : index
    %0 = vector.load %arg1[%c0, %c0_0, %c0_1] : memref<1x8x32xf32, #tpu.memory_space<vmem>>, vector<1x8x32xf32>
    %1 = vector.shape_cast %0 : vector<1x8x32xf32> to vector<8x32xf32>
    %c0_2 = arith.constant 0 : index
    %c0_3 = arith.constant 0 : index
    %2 = vector.load %arg2[%c0_2, %c0_3] : memref<1x32xf32, #tpu.memory_space<vmem>>, vector<1x32xf32>
    %c0_4 = arith.constant 0 : index
    %c0_5 = arith.constant 0 : index
    %3 = vector.load %arg3[%c0_4, %c0_5] : memref<1x32xf32, #tpu.memory_space<vmem>>, vector<1x32xf32>
    %cst = arith.constant dense<0.000000e+00> : vector<8xf32>
    %4 = vector.multi_reduction <add>, %1, %cst [1] : vector<8x32xf32> to vector<8xf32>
    %5 = vector.shape_cast %4 : vector<8xf32> to vector<8x1xf32>
    %cst_6 = arith.constant 3.200000e+01 : f32
    %6 = vector.broadcast %cst_6 : f32 to vector<8x1xf32>
    %7 = arith.divf %5, %6 : vector<8x1xf32>
    %8 = vector.broadcast %7 : vector<8x1xf32> to vector<8x32xf32>
    %9 = arith.subf %1, %8 : vector<8x32xf32>
    %10 = arith.mulf %9, %9 : vector<8x32xf32>
    %cst_7 = arith.constant dense<0.000000e+00> : vector<8xf32>
    %11 = vector.multi_reduction <add>, %10, %cst_7 [1] : vector<8x32xf32> to vector<8xf32>
    %12 = vector.shape_cast %11 : vector<8xf32> to vector<8x1xf32>
    %cst_8 = arith.constant 3.200000e+01 : f32
    %13 = vector.broadcast %cst_8 : f32 to vector<8x1xf32>
    %14 = arith.divf %12, %13 : vector<8x1xf32>
    %cst_9 = arith.constant 9.99999974E-6 : f32
    %15 = vector.broadcast %cst_9 : f32 to vector<8x1xf32>
    %16 = arith.addf %14, %15 : vector<8x1xf32>
    %17 = math.rsqrt %16 : vector<8x1xf32>
    %18 = vector.broadcast %17 : vector<8x1xf32> to vector<8x32xf32>
    %19 = arith.mulf %9, %18 : vector<8x32xf32>
    %20 = vector.broadcast %2 : vector<1x32xf32> to vector<8x32xf32>
    %21 = arith.mulf %19, %20 : vector<8x32xf32>
    %22 = vector.broadcast %3 : vector<1x32xf32> to vector<8x32xf32>
    %23 = arith.addf %21, %22 : vector<8x32xf32>
    %cst_10 = arith.constant 0.000000e+00 : f32
    %24 = vector.broadcast %cst_10 : f32 to vector<3x32xf32>
    %c0_11 = arith.constant 0 : index
    %c0_12 = arith.constant 0 : index
    %25 = vector.load %arg17[%c0_11, %c0_12] : memref<11x32xf32, #tpu.memory_space<vmem>>, vector<3x32xf32>
    tpu.vector_store %arg17[%c0_11, %c0_12], %24 {strides = array<i32>} : memref<11x32xf32, #tpu.memory_space<vmem>>, vector<3x32xf32>,
    %c3 = arith.constant 3 : index
    %c0_13 = arith.constant 0 : index
    %26 = vector.load %arg17[%c3, %c0_13] : memref<11x32xf32, #tpu.memory_space<vmem>>, vector<8x32xf32>
    tpu.vector_store %arg17[%c3, %c0_13], %23 {strides = array<i32>} : memref<11x32xf32, #tpu.memory_space<vmem>>, vector<8x32xf32>,
    %c0_14 = arith.constant 0 : index
    %c0_15 = arith.constant 0 : index
    %27 = vector.load %arg5[%c0_14, %c0_15] : memref<1x32xf32, #tpu.memory_space<vmem>>, vector<1x32xf32>
    %28 = vector.shape_cast %27 : vector<1x32xf32> to vector<1x32xf32>
    %29 = vector.broadcast %28 : vector<1x32xf32> to vector<8x32xf32>
    %c0_16 = arith.constant 0 : index
    %c0_17 = arith.constant 0 : index
    %30 = vector.load %arg4[%c0_16, %c0_17] : memref<4x32xf32, #tpu.memory_space<vmem>>, vector<1x32xf32>
    %c0_18 = arith.constant 0 : index
    %c0_19 = arith.constant 0 : index
    %31 = vector.load %arg17[%c0_18, %c0_19] : memref<11x32xf32, #tpu.memory_space<vmem>>, vector<8x32xf32>
    %32 = vector.broadcast %30 : vector<1x32xf32> to vector<8x32xf32>
    %33 = arith.mulf %32, %31 : vector<8x32xf32>
    %34 = arith.addf %29, %33 : vector<8x32xf32>
    %c1 = arith.constant 1 : index
    %c0_20 = arith.constant 0 : index
    %35 = vector.load %arg4[%c1, %c0_20] : memref<4x32xf32, #tpu.memory_space<vmem>>, vector<1x32xf32>
    %c1_21 = arith.constant 1 : index
    %c0_22 = arith.constant 0 : index
    %36 = vector.load %arg17[%c1_21, %c0_22] : memref<11x32xf32, #tpu.memory_space<vmem>>, vector<8x32xf32>
    %37 = vector.broadcast %35 : vector<1x32xf32> to vector<8x32xf32>
    %38 = arith.mulf %37, %36 : vector<8x32xf32>
    %39 = arith.addf %34, %38 : vector<8x32xf32>
    %c2 = arith.constant 2 : index
    %c0_23 = arith.constant 0 : index
    %40 = vector.load %arg4[%c2, %c0_23] : memref<4x32xf32, #tpu.memory_space<vmem>>, vector<1x32xf32>
    %c2_24 = arith.constant 2 : index
    %c0_25 = arith.constant 0 : index
    %41 = vector.load %arg17[%c2_24, %c0_25] : memref<11x32xf32, #tpu.memory_space<vmem>>, vector<8x32xf32>
    %42 = vector.broadcast %40 : vector<1x32xf32> to vector<8x32xf32>
    %43 = arith.mulf %42, %41 : vector<8x32xf32>
    %44 = arith.addf %39, %43 : vector<8x32xf32>
    %c3_26 = arith.constant 3 : index
    %c0_27 = arith.constant 0 : index
    %45 = vector.load %arg4[%c3_26, %c0_27] : memref<4x32xf32, #tpu.memory_space<vmem>>, vector<1x32xf32>
    %c3_28 = arith.constant 3 : index
    %c0_29 = arith.constant 0 : index
    %46 = vector.load %arg17[%c3_28, %c0_29] : memref<11x32xf32, #tpu.memory_space<vmem>>, vector<8x32xf32>
    %47 = vector.broadcast %45 : vector<1x32xf32> to vector<8x32xf32>
    %48 = arith.mulf %47, %46 : vector<8x32xf32>
    %49 = arith.addf %44, %48 : vector<8x32xf32>
    %cst_30 = arith.constant 0.000000e+00 : f32
    %50 = vector.broadcast %cst_30 : f32 to vector<8x32xf32>
    %51 = arith.subf %50, %49 : vector<8x32xf32>
    %52 = math.exp %51 : vector<8x32xf32>
    %cst_31 = arith.constant 1.000000e+00 : f32
    %53 = vector.broadcast %cst_31 : f32 to vector<8x32xf32>
    %54 = arith.addf %53, %52 : vector<8x32xf32>
    %cst_32 = arith.constant 1.000000e+00 : f32
    %55 = vector.broadcast %cst_32 : f32 to vector<8x32xf32>
    %56 = arith.divf %55, %54 : vector<8x32xf32>
    %57 = arith.mulf %49, %56 : vector<8x32xf32>
    %c0_33 = arith.constant 0 : index
    %c0_34 = arith.constant 0 : index
    %58 = vector.load %arg6[%c0_33, %c0_34] : memref<32x64xf32, #tpu.memory_space<vmem>>, vector<32x64xf32>
    %cst_35 = arith.constant dense<0.000000e+00> : vector<8x64xf32>
    %59 = tpu.matmul %57, %58, %cst_35 {dimension_numbers = #tpu.dot_dimension_numbers<[1], [0], [0], [1], [0, 0, 1, 1], [], []>} : vector<8x32xf32>, vector<32x64xf32>, vector<8x64xf32> -> vector<8x64xf32>
    %60 = vector.extract_strided_slice %59 {offsets = [0, 0], sizes = [8, 32], strides = [1, 1]} : vector<8x64xf32> to vector<8x32xf32>
    %c0_36 = arith.constant 0 : index
    %c0_37 = arith.constant 0 : index
    %61 = vector.load %arg7[%c0_36, %c0_37] : memref<1x32xf32, #tpu.memory_space<vmem>>, vector<1x32xf32>
    %62 = vector.broadcast %61 : vector<1x32xf32> to vector<8x32xf32>
    %63 = arith.addf %60, %62 : vector<8x32xf32>
    %64 = vector.extract_strided_slice %59 {offsets = [0, 32], sizes = [8, 16], strides = [1, 1]} : vector<8x64xf32> to vector<8x16xf32>
    %65 = vector.extract_strided_slice %59 {offsets = [0, 48], sizes = [8, 16], strides = [1, 1]} : vector<8x64xf32> to vector<8x16xf32>
    %cst_38 = arith.constant 0.000000e+00 : f32
    %66 = vector.broadcast %cst_38 : f32 to vector<8x32xf32>
    %67 = arith.maximumf %63, %66 : vector<8x32xf32>
    %68 = math.absf %63 : vector<8x32xf32>
    %cst_39 = arith.constant 0.000000e+00 : f32
    %69 = vector.broadcast %cst_39 : f32 to vector<8x32xf32>
    %70 = arith.subf %69, %68 : vector<8x32xf32>
    %71 = math.exp %70 : vector<8x32xf32>
    %cst_40 = arith.constant 1.000000e+00 : f32
    %72 = vector.broadcast %cst_40 : f32 to vector<8x32xf32>
    %73 = arith.addf %72, %71 : vector<8x32xf32>
    %74 = math.log %73 : vector<8x32xf32>
    %75 = arith.addf %67, %74 : vector<8x32xf32>
    %c0_41 = arith.constant 0 : index
    %c0_42 = arith.constant 0 : index
    %76 = vector.load %arg8[%c0_41, %c0_42] : memref<16x32xf32, #tpu.memory_space<vmem>>, vector<16x32xf32>
    %77 = math.exp %76 : vector<16x32xf32>
    %cst_43 = arith.constant 0.000000e+00 : f32
    %78 = vector.broadcast %cst_43 : f32 to vector<16x32xf32>
    %79 = arith.subf %78, %77 : vector<16x32xf32>
    %c0_44 = arith.constant 0 : index
    %c0_45 = arith.constant 0 : index
    %80 = vector.load %arg18[%c0_44, %c0_45] : memref<8x32xf32, #tpu.memory_space<vmem>>, vector<8x32xf32>
    tpu.vector_store %arg18[%c0_44, %c0_45], %75 {strides = array<i32>} : memref<8x32xf32, #tpu.memory_space<vmem>>, vector<8x32xf32>,
    %81 = arith.mulf %75, %57 : vector<8x32xf32>
    %c0_46 = arith.constant 0 : index
    %c0_47 = arith.constant 0 : index
    %82 = vector.load %arg19[%c0_46, %c0_47] : memref<8x32xf32, #tpu.memory_space<vmem>>, vector<8x32xf32>
    tpu.vector_store %arg19[%c0_46, %c0_47], %81 {strides = array<i32>} : memref<8x32xf32, #tpu.memory_space<vmem>>, vector<8x32xf32>,
    %c0_48 = arith.constant 0 : index
    %c0_49 = arith.constant 0 : index
    %83 = vector.load %arg20[%c0_48, %c0_49] : memref<8x16xf32, #tpu.memory_space<vmem>>, vector<8x16xf32>
    tpu.vector_store %arg20[%c0_48, %c0_49], %64 {strides = array<i32>} : memref<8x16xf32, #tpu.memory_space<vmem>>, vector<8x16xf32>,
    %c0_50 = arith.constant 0 : index
    %c0_51 = arith.constant 0 : index
    %84 = vector.load %arg21[%c0_50, %c0_51] : memref<8x16xf32, #tpu.memory_space<vmem>>, vector<8x16xf32>
    tpu.vector_store %arg21[%c0_50, %c0_51], %65 {strides = array<i32>} : memref<8x16xf32, #tpu.memory_space<vmem>>, vector<8x16xf32>,
    %85 = tpu.iota {dimensions = array<i32: 0>} : vector<16x16xi32>
    %86 = tpu.iota {dimensions = array<i32: 1>} : vector<16x16xi32>
    %87 = arith.cmpi eq, %85, %86 : vector<16x16xi32>
    %cst_52 = arith.constant 0.000000e+00 : f32
    %88 = vector.broadcast %cst_52 : f32 to vector<16x32xf32>
    %c0_i32 = arith.constant 0 : i32
    %c8_i32 = arith.constant 8 : i32
    %89 = arith.addi %c0_i32, %c8_i32 : i32
    %c1_i32 = arith.constant 1 : i32
    %90 = scf.for %arg23 = %c0_i32 to %89 step %c1_i32 iter_args(%arg24 = %88) -> (vector<16x32xf32>)  : i32 {
      %146 = arith.index_cast %arg23 : i32 to index
      %c0_84 = arith.constant 0 : index
      %147 = vector.load %arg18[%146, %c0_84] : memref<8x32xf32, #tpu.memory_space<vmem>>, vector<1x32xf32>
      %148 = arith.index_cast %arg23 : i32 to index
      %c0_85 = arith.constant 0 : index
      %149 = vector.load %arg19[%148, %c0_85] : memref<8x32xf32, #tpu.memory_space<vmem>>, vector<1x32xf32>
      %150 = arith.index_cast %arg23 : i32 to index
      %c0_86 = arith.constant 0 : index
      %151 = vector.load %arg20[%150, %c0_86] : memref<8x16xf32, #tpu.memory_space<vmem>>, vector<1x16xf32>
      %152 = vector.shape_cast %151 : vector<1x16xf32> to vector<1x16xf32>
      %153 = vector.broadcast %152 : vector<1x16xf32> to vector<16x16xf32>
      %cst_87 = arith.constant 0.000000e+00 : f32
      %154 = vector.broadcast %cst_87 : f32 to vector<16x16xf32>
      %155 = arith.select %87, %153, %154 : vector<16x16xi1>, vector<16x16xf32>
      %cst_88 = arith.constant dense<0.000000e+00> : vector<16xf32>
      %156 = vector.multi_reduction <add>, %155, %cst_88 [1] : vector<16x16xf32> to vector<16xf32>
      %157 = vector.shape_cast %156 : vector<16xf32> to vector<16x1xf32>
      %158 = arith.index_cast %arg23 : i32 to index
      %c0_89 = arith.constant 0 : index
      %159 = vector.load %arg21[%158, %c0_89] : memref<8x16xf32, #tpu.memory_space<vmem>>, vector<1x16xf32>
      %160 = vector.shape_cast %159 : vector<1x16xf32> to vector<1x16xf32>
      %161 = vector.broadcast %160 : vector<1x16xf32> to vector<16x16xf32>
      %cst_90 = arith.constant 0.000000e+00 : f32
      %162 = vector.broadcast %cst_90 : f32 to vector<16x16xf32>
      %163 = arith.select %87, %161, %162 : vector<16x16xi1>, vector<16x16xf32>
      %cst_91 = arith.constant dense<0.000000e+00> : vector<16xf32>
      %164 = vector.multi_reduction <add>, %163, %cst_91 [1] : vector<16x16xf32> to vector<16xf32>
      %165 = vector.shape_cast %164 : vector<16xf32> to vector<16x1xf32>
      %166 = vector.shape_cast %147 : vector<1x32xf32> to vector<1x32xf32>
      %167 = vector.broadcast %166 : vector<1x32xf32> to vector<16x32xf32>
      %168 = arith.mulf %167, %79 : vector<16x32xf32>
      %169 = math.exp %168 : vector<16x32xf32>
      %170 = vector.shape_cast %157 : vector<16x1xf32> to vector<16x1xf32>
      %171 = vector.broadcast %170 : vector<16x1xf32> to vector<16x32xf32>
      %172 = vector.shape_cast %149 : vector<1x32xf32> to vector<1x32xf32>
      %173 = vector.broadcast %172 : vector<1x32xf32> to vector<16x32xf32>
      %174 = arith.mulf %171, %173 : vector<16x32xf32>
      %175 = arith.mulf %169, %arg24 : vector<16x32xf32>
      %176 = arith.addf %175, %174 : vector<16x32xf32>
      %177 = vector.shape_cast %165 : vector<16x1xf32> to vector<16x1xf32>
      %178 = vector.broadcast %177 : vector<16x1xf32> to vector<16x32xf32>
      %179 = arith.mulf %178, %176 : vector<16x32xf32>
      %cst_92 = arith.constant dense<0.000000e+00> : vector<32xf32>
      %180 = vector.multi_reduction <add>, %179, %cst_92 [0] : vector<16x32xf32> to vector<32xf32>
      %181 = vector.shape_cast %180 : vector<32xf32> to vector<1x32xf32>
      %182 = arith.index_cast %arg23 : i32 to index
      %c0_93 = arith.constant 0 : index
      %183 = vector.load %arg22[%182, %c0_93] : memref<8x32xf32, #tpu.memory_space<vmem>>, vector<1x32xf32>
      tpu.vector_store %arg22[%182, %c0_93], %181 {strides = array<i32>} : memref<8x32xf32, #tpu.memory_space<vmem>>, vector<1x32xf32>,
      scf.yield %176 : vector<16x32xf32>
    }
    %c8_i32_53 = arith.constant 8 : i32
    %c0_54 = arith.constant 0 : index
    %c0_55 = arith.constant 0 : index
    %91 = vector.load %arg22[%c0_54, %c0_55] : memref<8x32xf32, #tpu.memory_space<vmem>>, vector<8x32xf32>
    %c0_56 = arith.constant 0 : index
    %c0_57 = arith.constant 0 : index
    %92 = vector.load %arg9[%c0_56, %c0_57] : memref<1x32xf32, #tpu.memory_space<vmem>>, vector<1x32xf32>
    %93 = vector.broadcast %92 : vector<1x32xf32> to vector<8x32xf32>
    %94 = arith.mulf %57, %93 : vector<8x32xf32>
    %95 = arith.addf %91, %94 : vector<8x32xf32>
    %96 = arith.addf %1, %95 : vector<8x32xf32>
    %c0_58 = arith.constant 0 : index
    %c0_59 = arith.constant 0 : index
    %97 = vector.load %arg10[%c0_58, %c0_59] : memref<1x32xf32, #tpu.memory_space<vmem>>, vector<1x32xf32>
    %c0_60 = arith.constant 0 : index
    %c0_61 = arith.constant 0 : index
    %98 = vector.load %arg11[%c0_60, %c0_61] : memref<1x32xf32, #tpu.memory_space<vmem>>, vector<1x32xf32>
    %cst_62 = arith.constant dense<0.000000e+00> : vector<8xf32>
    %99 = vector.multi_reduction <add>, %96, %cst_62 [1] : vector<8x32xf32> to vector<8xf32>
    %100 = vector.shape_cast %99 : vector<8xf32> to vector<8x1xf32>
    %cst_63 = arith.constant 3.200000e+01 : f32
    %101 = vector.broadcast %cst_63 : f32 to vector<8x1xf32>
    %102 = arith.divf %100, %101 : vector<8x1xf32>
    %103 = vector.broadcast %102 : vector<8x1xf32> to vector<8x32xf32>
    %104 = arith.subf %96, %103 : vector<8x32xf32>
    %105 = arith.mulf %104, %104 : vector<8x32xf32>
    %cst_64 = arith.constant dense<0.000000e+00> : vector<8xf32>
    %106 = vector.multi_reduction <add>, %105, %cst_64 [1] : vector<8x32xf32> to vector<8xf32>
    %107 = vector.shape_cast %106 : vector<8xf32> to vector<8x1xf32>
    %cst_65 = arith.constant 3.200000e+01 : f32
    %108 = vector.broadcast %cst_65 : f32 to vector<8x1xf32>
    %109 = arith.divf %107, %108 : vector<8x1xf32>
    %cst_66 = arith.constant 9.99999974E-6 : f32
    %110 = vector.broadcast %cst_66 : f32 to vector<8x1xf32>
    %111 = arith.addf %109, %110 : vector<8x1xf32>
    %112 = math.rsqrt %111 : vector<8x1xf32>
    %113 = vector.broadcast %112 : vector<8x1xf32> to vector<8x32xf32>
    %114 = arith.mulf %104, %113 : vector<8x32xf32>
    %115 = vector.broadcast %97 : vector<1x32xf32> to vector<8x32xf32>
    %116 = arith.mulf %114, %115 : vector<8x32xf32>
    %117 = vector.broadcast %98 : vector<1x32xf32> to vector<8x32xf32>
    %118 = arith.addf %116, %117 : vector<8x32xf32>
    %c0_67 = arith.constant 0 : index
    %c0_68 = arith.constant 0 : index
    %119 = vector.load %arg12[%c0_67, %c0_68] : memref<32x128xf32, #tpu.memory_space<vmem>>, vector<32x128xf32>
    %cst_69 = arith.constant dense<0.000000e+00> : vector<8x128xf32>
    %120 = tpu.matmul %118, %119, %cst_69 {dimension_numbers = #tpu.dot_dimension_numbers<[1], [0], [0], [1], [0, 0, 1, 1], [], []>} : vector<8x32xf32>, vector<32x128xf32>, vector<8x128xf32> -> vector<8x128xf32>
    %c0_70 = arith.constant 0 : index
    %c0_71 = arith.constant 0 : index
    %121 = vector.load %arg13[%c0_70, %c0_71] : memref<1x128xf32, #tpu.memory_space<vmem>>, vector<1x128xf32>
    %122 = vector.broadcast %121 : vector<1x128xf32> to vector<8x128xf32>
    %123 = arith.addf %120, %122 : vector<8x128xf32>
    %cst_72 = arith.constant 5.000000e-01 : f32
    %124 = vector.broadcast %cst_72 : f32 to vector<8x128xf32>
    %125 = arith.mulf %124, %123 : vector<8x128xf32>
    %cst_73 = arith.constant 4.471500e-02 : f32
    %126 = vector.broadcast %cst_73 : f32 to vector<8x128xf32>
    %127 = arith.mulf %126, %123 : vector<8x128xf32>
    %128 = arith.mulf %127, %123 : vector<8x128xf32>
    %129 = arith.mulf %128, %123 : vector<8x128xf32>
    %130 = arith.addf %123, %129 : vector<8x128xf32>
    %cst_74 = arith.constant 0.797884583 : f32
    %131 = vector.broadcast %cst_74 : f32 to vector<8x128xf32>
    %132 = arith.mulf %131, %130 : vector<8x128xf32>
    %133 = math.tanh %132 : vector<8x128xf32>
    %cst_75 = arith.constant 1.000000e+00 : f32
    %134 = vector.broadcast %cst_75 : f32 to vector<8x128xf32>
    %135 = arith.addf %134, %133 : vector<8x128xf32>
    %136 = arith.mulf %125, %135 : vector<8x128xf32>
    %c0_76 = arith.constant 0 : index
    %c0_77 = arith.constant 0 : index
    %137 = vector.load %arg14[%c0_76, %c0_77] : memref<128x32xf32, #tpu.memory_space<vmem>>, vector<128x32xf32>
    %cst_78 = arith.constant dense<0.000000e+00> : vector<8x32xf32>
    %138 = tpu.matmul %136, %137, %cst_78 {dimension_numbers = #tpu.dot_dimension_numbers<[1], [0], [0], [1], [0, 0, 1, 1], [], []>} : vector<8x128xf32>, vector<128x32xf32>, vector<8x32xf32> -> vector<8x32xf32>
    %c0_79 = arith.constant 0 : index
    %c0_80 = arith.constant 0 : index
    %139 = vector.load %arg15[%c0_79, %c0_80] : memref<1x32xf32, #tpu.memory_space<vmem>>, vector<1x32xf32>
    %140 = vector.broadcast %139 : vector<1x32xf32> to vector<8x32xf32>
    %141 = arith.addf %138, %140 : vector<8x32xf32>
    %142 = arith.addf %96, %141 : vector<8x32xf32>
    %c0_81 = arith.constant 0 : index
    %c0_82 = arith.constant 0 : index
    %c0_83 = arith.constant 0 : index
    %143 = vector.load %arg16[%c0_81, %c0_82, %c0_83] : memref<1x8x32xf32, #tpu.memory_space<vmem>>, vector<1x8x32xf32>
    %144 = vector.shape_cast %143 : vector<1x8x32xf32> to vector<8x32xf32>
    %145 = vector.shape_cast %142 : vector<8x32xf32> to vector<1x8x32xf32>
    tpu.vector_store %arg16[%c0_81, %c0_82, %c0_83], %145 {strides = array<i32>} : memref<1x8x32xf32, #tpu.memory_space<vmem>>, vector<1x8x32xf32>,
    return
  }
  func.func @transform_0(%arg0: i32) -> (i32, i32, i32) {
    %c0_i32 = arith.constant 0 : i32
    %c0_i32_0 = arith.constant 0 : i32
    %c0_i32_1 = arith.constant 0 : i32
    return %arg0, %c0_i32, %c0_i32_0 : i32, i32, i32
  }
  func.func @transform_1(%arg0: i32) -> (i32, i32) {
    %c0_i32 = arith.constant 0 : i32
    %c0_i32_0 = arith.constant 0 : i32
    %c0_i32_1 = arith.constant 0 : i32
    return %c0_i32, %c0_i32_0 : i32, i32
  }
  func.func @transform_2(%arg0: i32) -> (i32, i32) {
    %c0_i32 = arith.constant 0 : i32
    %c0_i32_0 = arith.constant 0 : i32
    %c0_i32_1 = arith.constant 0 : i32
    return %c0_i32, %c0_i32_0 : i32, i32
  }
  func.func @transform_3(%arg0: i32) -> (i32, i32) {
    %c0_i32 = arith.constant 0 : i32
    %c0_i32_0 = arith.constant 0 : i32
    %c0_i32_1 = arith.constant 0 : i32
    return %c0_i32, %c0_i32_0 : i32, i32
  }
  func.func @transform_4(%arg0: i32) -> (i32, i32) {
    %c0_i32 = arith.constant 0 : i32
    %c0_i32_0 = arith.constant 0 : i32
    %c0_i32_1 = arith.constant 0 : i32
    return %c0_i32, %c0_i32_0 : i32, i32
  }
  func.func @transform_5(%arg0: i32) -> (i32, i32) {
    %c0_i32 = arith.constant 0 : i32
    %c0_i32_0 = arith.constant 0 : i32
    %c0_i32_1 = arith.constant 0 : i32
    return %c0_i32, %c0_i32_0 : i32, i32
  }
  func.func @transform_6(%arg0: i32) -> (i32, i32) {
    %c0_i32 = arith.constant 0 : i32
    %c0_i32_0 = arith.constant 0 : i32
    %c0_i32_1 = arith.constant 0 : i32
    return %c0_i32, %c0_i32_0 : i32, i32
  }
  func.func @transform_7(%arg0: i32) -> (i32, i32) {
    %c0_i32 = arith.constant 0 : i32
    %c0_i32_0 = arith.constant 0 : i32
    %c0_i32_1 = arith.constant 0 : i32
    return %c0_i32, %c0_i32_0 : i32, i32
  }
  func.func @transform_8(%arg0: i32) -> (i32, i32) {
    %c0_i32 = arith.constant 0 : i32
    %c0_i32_0 = arith.constant 0 : i32
    %c0_i32_1 = arith.constant 0 : i32
    return %c0_i32, %c0_i32_0 : i32, i32
  }
  func.func @transform_9(%arg0: i32) -> (i32, i32) {
    %c0_i32 = arith.constant 0 : i32
    %c0_i32_0 = arith.constant 0 : i32
    %c0_i32_1 = arith.constant 0 : i32
    return %c0_i32, %c0_i32_0 : i32, i32
  }
  func.func @transform_10(%arg0: i32) -> (i32, i32) {
    %c0_i32 = arith.constant 0 : i32
    %c0_i32_0 = arith.constant 0 : i32
    %c0_i32_1 = arith.constant 0 : i32
    return %c0_i32, %c0_i32_0 : i32, i32
  }
  func.func @transform_11(%arg0: i32) -> (i32, i32) {
    %c0_i32 = arith.constant 0 : i32
    %c0_i32_0 = arith.constant 0 : i32
    %c0_i32_1 = arith.constant 0 : i32
    return %c0_i32, %c0_i32_0 : i32, i32
  }
  func.func @transform_12(%arg0: i32) -> (i32, i32) {
    %c0_i32 = arith.constant 0 : i32
    %c0_i32_0 = arith.constant 0 : i32
    %c0_i32_1 = arith.constant 0 : i32
    return %c0_i32, %c0_i32_0 : i32, i32
  }
  func.func @transform_13(%arg0: i32) -> (i32, i32) {
    %c0_i32 = arith.constant 0 : i32
    %c0_i32_0 = arith.constant 0 : i32
    %c0_i32_1 = arith.constant 0 : i32
    return %c0_i32, %c0_i32_0 : i32, i32
  }
  func.func @transform_14(%arg0: i32) -> (i32, i32) {
    %c0_i32 = arith.constant 0 : i32
    %c0_i32_0 = arith.constant 0 : i32
    %c0_i32_1 = arith.constant 0 : i32
    return %c0_i32, %c0_i32_0 : i32, i32
  }
  func.func @transform_15(%arg0: i32) -> (i32, i32, i32) {
    %c0_i32 = arith.constant 0 : i32
    %c0_i32_0 = arith.constant 0 : i32
    %c0_i32_1 = arith.constant 0 : i32
    return %arg0, %c0_i32, %c0_i32_0 : i32, i32, i32
  }
}

</mosaic_0001>

<llo_original>
// kernel: tpu_custom_call.1
$region0: #{tpu_custom_call.1}
  #allocation0 [shape = 'u32[]', space=smem, size = 0x4, offset = 0x4, fixed_abs, tag = 'smem constant byte address 0x4 - core index']
  #allocation1 [shape = 'u32[72,128]{1,0:T(1,128)}', space=vmem, size = 0x9000, scoped, tag = 'internal scratch']
  #allocation2 [shape = 'f32[11,32]{1,0:T(8,128)}', space=vmem, size = 0x2000, scoped, tag = 'scratch operand']
  #allocation3 [shape = 'f32[8,32]{1,0:T(8,128)}', space=vmem, size = 0x1000, scoped, tag = 'scratch operand']
  #allocation4 [shape = 'f32[8,32]{1,0:T(8,128)}', space=vmem, size = 0x1000, scoped, tag = 'scratch operand']
  #allocation5 [shape = 'f32[8,16]{1,0:T(8,128)}', space=vmem, size = 0x1000, scoped, tag = 'scratch operand']
  #allocation6 [shape = 'f32[8,16]{1,0:T(8,128)}', space=vmem, size = 0x1000, scoped, tag = 'scratch operand']
  #allocation7 [shape = 'f32[8,32]{1,0:T(8,128)}', space=vmem, size = 0x1000, scoped, tag = 'scratch operand']
  %s0 = inlined_call_operand.vmem [shape: f32[2,8,32], index: 0, kind: input, shape index: {}]
  %s1 = inlined_call_operand.vmem [shape: f32[1,32], index: 1, kind: input, shape index: {}]
  %s2 = inlined_call_operand.vmem [shape: f32[1,32], index: 2, kind: input, shape index: {}]
  %s3 = inlined_call_operand.vmem [shape: f32[4,32], index: 3, kind: input, shape index: {}]
  %s4 = inlined_call_operand.vmem [shape: f32[1,32], index: 4, kind: input, shape index: {}]
  %s5 = inlined_call_operand.vmem [shape: f32[32,64], index: 5, kind: input, shape index: {}]
  %s6 = inlined_call_operand.vmem [shape: f32[1,32], index: 6, kind: input, shape index: {}]
  %s7 = inlined_call_operand.vmem [shape: f32[16,32], index: 7, kind: input, shape index: {}]
  %s8 = inlined_call_operand.vmem [shape: f32[1,32], index: 8, kind: input, shape index: {}]
  %s9 = inlined_call_operand.vmem [shape: f32[1,32], index: 9, kind: input, shape index: {}]
  %s10 = inlined_call_operand.vmem [shape: f32[1,32], index: 10, kind: input, shape index: {}]
  %s11 = inlined_call_operand.vmem [shape: f32[32,128], index: 11, kind: input, shape index: {}]
  %s12 = inlined_call_operand.vmem [shape: f32[1,128], index: 12, kind: input, shape index: {}]
  %s13 = inlined_call_operand.vmem [shape: f32[128,32], index: 13, kind: input, shape index: {}]
  %s14 = inlined_call_operand.vmem [shape: f32[1,32], index: 14, kind: input, shape index: {}]
  %s15 = inlined_call_operand.hbm [shape: f32[2,8,32], index: 15, kind: output, shape index: {}]
  %s16 = sld [smem:[#allocation0]]
  $region100: #{tpu_custom_call.1} parent=0
    _
  %s18 = ssub.s32 1, %s16
  %s19 = scalar_select 0, %s18, %s16
  $region1: #{tpu_custom_call.1} parent=0
    #allocation8 [shape = 'u8[8192]{0}', space=vmem, size = 0x2000, scoped, tag = 'output window, operand 0']
    #allocation9 [shape = 's32[2]{0}', space=sflag, size = 0x8, scoped, tag = 'scoped memory for tpu_custom_call.1']
    %20 = vsyncpa [#allocation9], 0
    %s21 = scalar_lea.sflag [#allocation9], 1
    %22 = vsyncpa %s21, 0
    loop: start=0, step=1, limit=4
    $region2: #{tpu_custom_call.1} parent=1 // loop_pre_header
      _
    $region3: #{tpu_custom_call.1} parent=1 // loop_header
      %s24 = sphi 0, %s28
      %p25 = scmp.ge.s32.totalorder %s24, 4
      %s34 = sphi 0, %s36
      %s37 = sphi 0, %s34
      %s38 = sphi 0, %s37
      %s54 = sphi 0, %s38
      %s58 = sphi 0, %s58
      %s60 = sphi 0, %s58
      %s61 = sphi 0, %s60
      %s75 = sphi 0, %s61
      %s79 = sphi 0, %s79
      %s81 = sphi 0, %s79
      %s82 = sphi 0, %s81
      %s96 = sphi 0, %s82
      %s100 = sphi 0, %s100
      %s102 = sphi 0, %s100
      %s103 = sphi 0, %s102
      %s117 = sphi 0, %s103
      %s121 = sphi 0, %s121
      %s123 = sphi 0, %s121
      %s124 = sphi 0, %s123
      %s138 = sphi 0, %s124
      %s142 = sphi 0, %s142
      %s144 = sphi 0, %s142
      %s145 = sphi 0, %s144
      %s159 = sphi 0, %s145
      %s163 = sphi 0, %s163
      %s165 = sphi 0, %s163
      %s166 = sphi 0, %s165
      %s180 = sphi 0, %s166
      %s184 = sphi 0, %s184
      %s186 = sphi 0, %s184
      %s187 = sphi 0, %s186
      %s201 = sphi 0, %s187
      %s205 = sphi 0, %s205
      %s207 = sphi 0, %s205
      %s208 = sphi 0, %s207
      %s222 = sphi 0, %s208
      %s226 = sphi 0, %s226
      %s228 = sphi 0, %s226
      %s229 = sphi 0, %s228
      %s243 = sphi 0, %s229
      %s247 = sphi 0, %s247
      %s249 = sphi 0, %s247
      %s250 = sphi 0, %s249
      %s264 = sphi 0, %s250
      %s268 = sphi 0, %s268
      %s270 = sphi 0, %s268
      %s271 = sphi 0, %s270
      %s285 = sphi 0, %s271
      %s289 = sphi 0, %s289
      %s291 = sphi 0, %s289
      %s292 = sphi 0, %s291
      %s306 = sphi 0, %s292
      %s310 = sphi 0, %s310
      %s312 = sphi 0, %s310
      %s313 = sphi 0, %s312
      %s327 = sphi 0, %s313
      %s331 = sphi 0, %s331
      %s333 = sphi 0, %s331
      %s334 = sphi 0, %s333
      %s348 = sphi 0, %s334
      %s354 = sphi 0, %s356
      %s357 = sphi 0, %s354
      %s358 = sphi 0, %s357
      %s374 = sphi 0, %s358
    $region4: #{tpu_custom_call.1} parent=1 // loop_header_branch
      %27 = sbr.rel (%p25) target = $region8
    $region5: #{tpu_custom_call.1} parent=1 // loop_body
      %s29 = ssub.s32 %s24, 1
      %s30 = ssub.s32 %s24, 2
      %s31 = sadd.s32 %s24, 1
      %s32 = ssub.s32 %s24, %s31
      %p33 = scmp.eq.s32.totalorder %s32, 0
      %s35 = sadd.s32 %s34, 1
      %s36 = scalar_select %p33, %s34, %s35
      %p39 = pneg %p33
      %p40 = scmp.eq.s32.totalorder %s24, 1
      %p41 = por %p39, %p40
      %p42 = scmp.ne.s32.totalorder %s34, %s37
      %p43 = scmp.eq.s32.totalorder %s24, 0
      %p44 = por %p42, %p43
      %p45 = scmp.ne.s32.totalorder %s34, %s37
      %p46 = scmp.eq.s32.totalorder %s29, 1
      %p47 = por %p45, %p46
      %p48 = scmp.ne.s32.totalorder %s37, %s38
      %p49 = scmp.eq.s32.totalorder %s29, 0
      %p50 = por %p48, %p49
      %p51 = scmp.ne.s32.totalorder %s37, %s38
      %p52 = scmp.eq.s32.totalorder %s30, 1
      %p53 = por %p51, %p52
      %p55 = scmp.ne.s32.totalorder %s38, %s54
      %p56 = scmp.eq.s32.totalorder %s30, 0
      %p57 = por %p55, %p56
      %s59 = sadd.s32 %s58, 1
      %p62 = scmp.eq.s32.totalorder %s24, 1
      %p63 = scmp.ne.s32.totalorder %s58, %s60
      %p64 = scmp.eq.s32.totalorder %s24, 0
      %p65 = por %p63, %p64
      %p66 = scmp.ne.s32.totalorder %s58, %s60
      %p67 = scmp.eq.s32.totalorder %s29, 1
      %p68 = por %p66, %p67
      %p69 = scmp.ne.s32.totalorder %s60, %s61
      %p70 = scmp.eq.s32.totalorder %s29, 0
      %p71 = por %p69, %p70
      %p72 = scmp.ne.s32.totalorder %s60, %s61
      %p73 = scmp.eq.s32.totalorder %s30, 1
      %p74 = por %p72, %p73
      %p76 = scmp.ne.s32.totalorder %s61, %s75
      %p77 = scmp.eq.s32.totalorder %s30, 0
      %p78 = por %p76, %p77
      %s80 = sadd.s32 %s79, 1
      %p83 = scmp.eq.s32.totalorder %s24, 1
      %p84 = scmp.ne.s32.totalorder %s79, %s81
      %p85 = scmp.eq.s32.totalorder %s24, 0
      %p86 = por %p84, %p85
      %p87 = scmp.ne.s32.totalorder %s79, %s81
      %p88 = scmp.eq.s32.totalorder %s29, 1
      %p89 = por %p87, %p88
      %p90 = scmp.ne.s32.totalorder %s81, %s82
      %p91 = scmp.eq.s32.totalorder %s29, 0
      %p92 = por %p90, %p91
      %p93 = scmp.ne.s32.totalorder %s81, %s82
      %p94 = scmp.eq.s32.totalorder %s30, 1
      %p95 = por %p93, %p94
      %p97 = scmp.ne.s32.totalorder %s82, %s96
      %p98 = scmp.eq.s32.totalorder %s30, 0
      %p99 = por %p97, %p98
      %s101 = sadd.s32 %s100, 1
      %p104 = scmp.eq.s32.totalorder %s24, 1
      %p105 = scmp.ne.s32.totalorder %s100, %s102
      %p106 = scmp.eq.s32.totalorder %s24, 0
      %p107 = por %p105, %p106
      %p108 = scmp.ne.s32.totalorder %s100, %s102
      %p109 = scmp.eq.s32.totalorder %s29, 1
      %p110 = por %p108, %p109
      %p111 = scmp.ne.s32.totalorder %s102, %s103
      %p112 = scmp.eq.s32.totalorder %s29, 0
      %p113 = por %p111, %p112
      %p114 = scmp.ne.s32.totalorder %s102, %s103
      %p115 = scmp.eq.s32.totalorder %s30, 1
      %p116 = por %p114, %p115
      %p118 = scmp.ne.s32.totalorder %s103, %s117
      %p119 = scmp.eq.s32.totalorder %s30, 0
      %p120 = por %p118, %p119
      %s122 = sadd.s32 %s121, 1
      %p125 = scmp.eq.s32.totalorder %s24, 1
      %p126 = scmp.ne.s32.totalorder %s121, %s123
      %p127 = scmp.eq.s32.totalorder %s24, 0
      %p128 = por %p126, %p127
      %p129 = scmp.ne.s32.totalorder %s121, %s123
      %p130 = scmp.eq.s32.totalorder %s29, 1
      %p131 = por %p129, %p130
      %p132 = scmp.ne.s32.totalorder %s123, %s124
      %p133 = scmp.eq.s32.totalorder %s29, 0
      %p134 = por %p132, %p133
      %p135 = scmp.ne.s32.totalorder %s123, %s124
      %p136 = scmp.eq.s32.totalorder %s30, 1
      %p137 = por %p135, %p136
      %p139 = scmp.ne.s32.totalorder %s124, %s138
      %p140 = scmp.eq.s32.totalorder %s30, 0
      %p141 = por %p139, %p140
      %s143 = sadd.s32 %s142, 1
      %p146 = scmp.eq.s32.totalorder %s24, 1
      %p147 = scmp.ne.s32.totalorder %s142, %s144
      %p148 = scmp.eq.s32.totalorder %s24, 0
      %p149 = por %p147, %p148
      %p150 = scmp.ne.s32.totalorder %s142, %s144
      %p151 = scmp.eq.s32.totalorder %s29, 1
      %p152 = por %p150, %p151
      %p153 = scmp.ne.s32.totalorder %s144, %s145
      %p154 = scmp.eq.s32.totalorder %s29, 0
      %p155 = por %p153, %p154
      %p156 = scmp.ne.s32.totalorder %s144, %s145
      %p157 = scmp.eq.s32.totalorder %s30, 1
      %p158 = por %p156, %p157
      %p160 = scmp.ne.s32.totalorder %s145, %s159
      %p161 = scmp.eq.s32.totalorder %s30, 0
      %p162 = por %p160, %p161
      %s164 = sadd.s32 %s163, 1
      %p167 = scmp.eq.s32.totalorder %s24, 1
      %p168 = scmp.ne.s32.totalorder %s163, %s165
      %p169 = scmp.eq.s32.totalorder %s24, 0
      %p170 = por %p168, %p169
      %p171 = scmp.ne.s32.totalorder %s163, %s165
      %p172 = scmp.eq.s32.totalorder %s29, 1
      %p173 = por %p171, %p172
      %p174 = scmp.ne.s32.totalorder %s165, %s166
      %p175 = scmp.eq.s32.totalorder %s29, 0
      %p176 = por %p174, %p175
      %p177 = scmp.ne.s32.totalorder %s165, %s166
      %p178 = scmp.eq.s32.totalorder %s30, 1
      %p179 = por %p177, %p178
      %p181 = scmp.ne.s32.totalorder %s166, %s180
      %p182 = scmp.eq.s32.totalorder %s30, 0
      %p183 = por %p181, %p182
      %s185 = sadd.s32 %s184, 1
      %p188 = scmp.eq.s32.totalorder %s24, 1
      %p189 = scmp.ne.s32.totalorder %s184, %s186
      %p190 = scmp.eq.s32.totalorder %s24, 0
      %p191 = por %p189, %p190
      %p192 = scmp.ne.s32.totalorder %s184, %s186
      %p193 = scmp.eq.s32.totalorder %s29, 1
      %p194 = por %p192, %p193
      %p195 = scmp.ne.s32.totalorder %s186, %s187
      %p196 = scmp.eq.s32.totalorder %s29, 0
      %p197 = por %p195, %p196
      %p198 = scmp.ne.s32.totalorder %s186, %s187
      %p199 = scmp.eq.s32.totalorder %s30, 1
      %p200 = por %p198, %p199
      %p202 = scmp.ne.s32.totalorder %s187, %s201
      %p203 = scmp.eq.s32.totalorder %s30, 0
      %p204 = por %p202, %p203
      %s206 = sadd.s32 %s205, 1
      %p209 = scmp.eq.s32.totalorder %s24, 1
      %p210 = scmp.ne.s32.totalorder %s205, %s207
      %p211 = scmp.eq.s32.totalorder %s24, 0
      %p212 = por %p210, %p211
      %p213 = scmp.ne.s32.totalorder %s205, %s207
      %p214 = scmp.eq.s32.totalorder %s29, 1
      %p215 = por %p213, %p214
      %p216 = scmp.ne.s32.totalorder %s207, %s208
      %p217 = scmp.eq.s32.totalorder %s29, 0
      %p218 = por %p216, %p217
      %p219 = scmp.ne.s32.totalorder %s207, %s208
      %p220 = scmp.eq.s32.totalorder %s30, 1
      %p221 = por %p219, %p220
      %p223 = scmp.ne.s32.totalorder %s208, %s222
      %p224 = scmp.eq.s32.totalorder %s30, 0
      %p225 = por %p223, %p224
      %s227 = sadd.s32 %s226, 1
      %p230 = scmp.eq.s32.totalorder %s24, 1
      %p231 = scmp.ne.s32.totalorder %s226, %s228
      %p232 = scmp.eq.s32.totalorder %s24, 0
      %p233 = por %p231, %p232
      %p234 = scmp.ne.s32.totalorder %s226, %s228
      %p235 = scmp.eq.s32.totalorder %s29, 1
      %p236 = por %p234, %p235
      %p237 = scmp.ne.s32.totalorder %s228, %s229
      %p238 = scmp.eq.s32.totalorder %s29, 0
      %p239 = por %p237, %p238
      %p240 = scmp.ne.s32.totalorder %s228, %s229
      %p241 = scmp.eq.s32.totalorder %s30, 1
      %p242 = por %p240, %p241
      %p244 = scmp.ne.s32.totalorder %s229, %s243
      %p245 = scmp.eq.s32.totalorder %s30, 0
      %p246 = por %p244, %p245
      %s248 = sadd.s32 %s247, 1
      %p251 = scmp.eq.s32.totalorder %s24, 1
      %p252 = scmp.ne.s32.totalorder %s247, %s249
      %p253 = scmp.eq.s32.totalorder %s24, 0
      %p254 = por %p252, %p253
      %p255 = scmp.ne.s32.totalorder %s247, %s249
      %p256 = scmp.eq.s32.totalorder %s29, 1
      %p257 = por %p255, %p256
      %p258 = scmp.ne.s32.totalorder %s249, %s250
      %p259 = scmp.eq.s32.totalorder %s29, 0
      %p260 = por %p258, %p259
      %p261 = scmp.ne.s32.totalorder %s249, %s250
      %p262 = scmp.eq.s32.totalorder %s30, 1
      %p263 = por %p261, %p262
      %p265 = scmp.ne.s32.totalorder %s250, %s264
      %p266 = scmp.eq.s32.totalorder %s30, 0
      %p267 = por %p265, %p266
      %s269 = sadd.s32 %s268, 1
      %p272 = scmp.eq.s32.totalorder %s24, 1
      %p273 = scmp.ne.s32.totalorder %s268, %s270
      %p274 = scmp.eq.s32.totalorder %s24, 0
      %p275 = por %p273, %p274
      %p276 = scmp.ne.s32.totalorder %s268, %s270
      %p277 = scmp.eq.s32.totalorder %s29, 1
      %p278 = por %p276, %p277
      %p279 = scmp.ne.s32.totalorder %s270, %s271
      %p280 = scmp.eq.s32.totalorder %s29, 0
      %p281 = por %p279, %p280
      %p282 = scmp.ne.s32.totalorder %s270, %s271
      %p283 = scmp.eq.s32.totalorder %s30, 1
      %p284 = por %p282, %p283
      %p286 = scmp.ne.s32.totalorder %s271, %s285
      %p287 = scmp.eq.s32.totalorder %s30, 0
      %p288 = por %p286, %p287
      %s290 = sadd.s32 %s289, 1
      %p293 = scmp.eq.s32.totalorder %s24, 1
      %p294 = scmp.ne.s32.totalorder %s289, %s291
      %p295 = scmp.eq.s32.totalorder %s24, 0
      %p296 = por %p294, %p295
      %p297 = scmp.ne.s32.totalorder %s289, %s291
      %p298 = scmp.eq.s32.totalorder %s29, 1
      %p299 = por %p297, %p298
      %p300 = scmp.ne.s32.totalorder %s291, %s292
      %p301 = scmp.eq.s32.totalorder %s29, 0
      %p302 = por %p300, %p301
      %p303 = scmp.ne.s32.totalorder %s291, %s292
      %p304 = scmp.eq.s32.totalorder %s30, 1
      %p305 = por %p303, %p304
      %p307 = scmp.ne.s32.totalorder %s292, %s306
      %p308 = scmp.eq.s32.totalorder %s30, 0
      %p309 = por %p307, %p308
      %s311 = sadd.s32 %s310, 1
      %p314 = scmp.eq.s32.totalorder %s24, 1
      %p315 = scmp.ne.s32.totalorder %s310, %s312
      %p316 = scmp.eq.s32.totalorder %s24, 0
      %p317 = por %p315, %p316
      %p318 = scmp.ne.s32.totalorder %s310, %s312
      %p319 = scmp.eq.s32.totalorder %s29, 1
      %p320 = por %p318, %p319
      %p321 = scmp.ne.s32.totalorder %s312, %s313
      %p322 = scmp.eq.s32.totalorder %s29, 0
      %p323 = por %p321, %p322
      %p324 = scmp.ne.s32.totalorder %s312, %s313
      %p325 = scmp.eq.s32.totalorder %s30, 1
      %p326 = por %p324, %p325
      %p328 = scmp.ne.s32.totalorder %s313, %s327
      %p329 = scmp.eq.s32.totalorder %s30, 0
      %p330 = por %p328, %p329
      %s332 = sadd.s32 %s331, 1
      %p335 = scmp.eq.s32.totalorder %s24, 1
      %p336 = scmp.ne.s32.totalorder %s331, %s333
      %p337 = scmp.eq.s32.totalorder %s24, 0
      %p338 = por %p336, %p337
      %p339 = scmp.ne.s32.totalorder %s331, %s333
      %p340 = scmp.eq.s32.totalorder %s29, 1
      %p341 = por %p339, %p340
      %p342 = scmp.ne.s32.totalorder %s333, %s334
      %p343 = scmp.eq.s32.totalorder %s29, 0
      %p344 = por %p342, %p343
      %p345 = scmp.ne.s32.totalorder %s333, %s334
      %p346 = scmp.eq.s32.totalorder %s30, 1
      %p347 = por %p345, %p346
      %p349 = scmp.ne.s32.totalorder %s334, %s348
      %p350 = scmp.eq.s32.totalorder %s30, 0
      %p351 = por %p349, %p350
      %s352 = ssub.s32 %s24, %s31
      %p353 = scmp.eq.s32.totalorder %s352, 0
      %s355 = sadd.s32 %s354, 1
      %s356 = scalar_select %p353, %s354, %s355
      %p359 = pneg %p353
      %p360 = scmp.eq.s32.totalorder %s24, 1
      %p361 = por %p359, %p360
      %p362 = scmp.ne.s32.totalorder %s354, %s357
      %p363 = scmp.eq.s32.totalorder %s24, 0
      %p364 = por %p362, %p363
      %p365 = scmp.ne.s32.totalorder %s354, %s357
      %p366 = scmp.eq.s32.totalorder %s29, 1
      %p367 = por %p365, %p366
      %p368 = scmp.ne.s32.totalorder %s357, %s358
      %p369 = scmp.eq.s32.totalorder %s29, 0
      %p370 = por %p368, %p369
      %p371 = scmp.ne.s32.totalorder %s357, %s358
      %p372 = scmp.eq.s32.totalorder %s30, 1
      %p373 = por %p371, %p372
      %p375 = scmp.ne.s32.totalorder %s358, %s374
      %p376 = scmp.eq.s32.totalorder %s30, 0
      %p377 = por %p375, %p376
      %p378 = scmp.le.s32.totalorder 1, %s24
      %p379 = scmp.lt.s32.totalorder %s24, 3
      %p380 = pnand %p378, %p379
      %p381 = pneg %p380
      // Predicated region
      $region9: #{tpu_custom_call.1} parent=5 // pred_check
        _
      $region10: #{tpu_custom_call.1} parent=5 // pred_check_branch
        %383 = sbr.rel (%p380) target = $region12
      $region11: #{tpu_custom_call.1} parent=5 // pred_region
        %s384 = ssub.s32 %s24, 1
        // Predicated region
        $region13: #{tpu_custom_call.1} parent=11 // pred_check
          %p385 = pneg %p71
        $region14: #{tpu_custom_call.1} parent=11 // pred_check_branch
          %387 = sbr.rel (%p385) target = $region16
        $region15: #{tpu_custom_call.1} parent=11 // pred_region
          _
        $region16: #{tpu_custom_call.1} parent=11 // pred_fallthru
          _
        // Predicated region
        $region17: #{tpu_custom_call.1} parent=11 // pred_check
          %p388 = pneg %p92
        $region18: #{tpu_custom_call.1} parent=11 // pred_check_branch
          %390 = sbr.rel (%p388) target = $region20
        $region19: #{tpu_custom_call.1} parent=11 // pred_region
          _
        $region20: #{tpu_custom_call.1} parent=11 // pred_fallthru
          _
        // Predicated region
        $region21: #{tpu_custom_call.1} parent=11 // pred_check
          %p391 = pneg %p113
        $region22: #{tpu_custom_call.1} parent=11 // pred_check_branch
          %393 = sbr.rel (%p391) target = $region24
        $region23: #{tpu_custom_call.1} parent=11 // pred_region
          _
        $region24: #{tpu_custom_call.1} parent=11 // pred_fallthru
          _
        // Predicated region
        $region25: #{tpu_custom_call.1} parent=11 // pred_check
          %p394 = pneg %p134
        $region26: #{tpu_custom_call.1} parent=11 // pred_check_branch
          %396 = sbr.rel (%p394) target = $region28
        $region27: #{tpu_custom_call.1} parent=11 // pred_region
          _
        $region28: #{tpu_custom_call.1} parent=11 // pred_fallthru
          _
        // Predicated region
        $region29: #{tpu_custom_call.1} parent=11 // pred_check
          %p397 = pneg %p155
        $region30: #{tpu_custom_call.1} parent=11 // pred_check_branch
          %399 = sbr.rel (%p397) target = $region32
        $region31: #{tpu_custom_call.1} parent=11 // pred_region
          _
        $region32: #{tpu_custom_call.1} parent=11 // pred_fallthru
          _
        // Predicated region
        $region33: #{tpu_custom_call.1} parent=11 // pred_check
          %p400 = pneg %p176
        $region34: #{tpu_custom_call.1} parent=11 // pred_check_branch
          %402 = sbr.rel (%p400) target = $region36
        $region35: #{tpu_custom_call.1} parent=11 // pred_region
          _
        $region36: #{tpu_custom_call.1} parent=11 // pred_fallthru
          _
        // Predicated region
        $region37: #{tpu_custom_call.1} parent=11 // pred_check
          %p403 = pneg %p197
        $region38: #{tpu_custom_call.1} parent=11 // pred_check_branch
          %405 = sbr.rel (%p403) target = $region40
        $region39: #{tpu_custom_call.1} parent=11 // pred_region
          _
        $region40: #{tpu_custom_call.1} parent=11 // pred_fallthru
          _
        // Predicated region
        $region41: #{tpu_custom_call.1} parent=11 // pred_check
          %p406 = pneg %p218
        $region42: #{tpu_custom_call.1} parent=11 // pred_check_branch
          %408 = sbr.rel (%p406) target = $region44
        $region43: #{tpu_custom_call.1} parent=11 // pred_region
          _
        $region44: #{tpu_custom_call.1} parent=11 // pred_fallthru
          _
        // Predicated region
        $region45: #{tpu_custom_call.1} parent=11 // pred_check
          %p409 = pneg %p239
        $region46: #{tpu_custom_call.1} parent=11 // pred_check_branch
          %411 = sbr.rel (%p409) target = $region48
        $region47: #{tpu_custom_call.1} parent=11 // pred_region
          _
        $region48: #{tpu_custom_call.1} parent=11 // pred_fallthru
          _
        // Predicated region
        $region49: #{tpu_custom_call.1} parent=11 // pred_check
          %p412 = pneg %p260
        $region50: #{tpu_custom_call.1} parent=11 // pred_check_branch
          %414 = sbr.rel (%p412) target = $region52
        $region51: #{tpu_custom_call.1} parent=11 // pred_region
          _
        $region52: #{tpu_custom_call.1} parent=11 // pred_fallthru
          _
        // Predicated region
        $region53: #{tpu_custom_call.1} parent=11 // pred_check
          %p415 = pneg %p281
        $region54: #{tpu_custom_call.1} parent=11 // pred_check_branch
          %417 = sbr.rel (%p415) target = $region56
        $region55: #{tpu_custom_call.1} parent=11 // pred_region
          _
        $region56: #{tpu_custom_call.1} parent=11 // pred_fallthru
          _
        // Predicated region
        $region57: #{tpu_custom_call.1} parent=11 // pred_check
          %p418 = pneg %p302
        $region58: #{tpu_custom_call.1} parent=11 // pred_check_branch
          %420 = sbr.rel (%p418) target = $region60
        $region59: #{tpu_custom_call.1} parent=11 // pred_region
          _
        $region60: #{tpu_custom_call.1} parent=11 // pred_fallthru
          _
        // Predicated region
        $region61: #{tpu_custom_call.1} parent=11 // pred_check
          %p421 = pneg %p323
        $region62: #{tpu_custom_call.1} parent=11 // pred_check_branch
          %423 = sbr.rel (%p421) target = $region64
        $region63: #{tpu_custom_call.1} parent=11 // pred_region
          _
        $region64: #{tpu_custom_call.1} parent=11 // pred_fallthru
          _
        // Predicated region
        $region65: #{tpu_custom_call.1} parent=11 // pred_check
          %p424 = pneg %p344
        $region66: #{tpu_custom_call.1} parent=11 // pred_check_branch
          %426 = sbr.rel (%p424) target = $region68
        $region67: #{tpu_custom_call.1} parent=11 // pred_region
          _
        $region68: #{tpu_custom_call.1} parent=11 // pred_fallthru
          _
      $region12: #{tpu_custom_call.1} parent=5 // pred_fallthru
        _
      %p427 = scmp.lt.s32.totalorder %s24, 2
      // Predicated region
      $region69: #{tpu_custom_call.1} parent=5 // pred_check
        %p428 = pneg %p427
      $region70: #{tpu_custom_call.1} parent=5 // pred_check_branch
        %430 = sbr.rel (%p428) target = $region72
      $region71: #{tpu_custom_call.1} parent=5 // pred_region
        // Predicated region
        $region73: #{tpu_custom_call.1} parent=71 // pred_check
          %p431 = pneg %p44
        $region74: #{tpu_custom_call.1} parent=71 // pred_check_branch
          %433 = sbr.rel (%p431) target = $region76
        $region75: #{tpu_custom_call.1} parent=71 // pred_region
          %p434 = scmp.lt.s32.totalorder %s24, 1
          %s435 = scalar_select %p434, %s24, 1
          %s436 = smul.addr %s435, 8
          %s437 = scalar_lea.vmem %s0, %s436
        $region76: #{tpu_custom_call.1} parent=71 // pred_fallthru
          _
      $region72: #{tpu_custom_call.1} parent=5 // pred_fallthru
        _
      %p438 = scmp.le.s32.totalorder 1, %s24
      %p439 = scmp.lt.s32.totalorder %s24, 3
      %p440 = pnand %p438, %p439
      %p441 = pneg %p440
      // Predicated region
      $region77: #{tpu_custom_call.1} parent=5 // pred_check
        _
      $region78: #{tpu_custom_call.1} parent=5 // pred_check_branch
        %443 = sbr.rel (%p440) target = $region80
      $region79: #{tpu_custom_call.1} parent=5 // pred_region
        %s444 = ssub.s32 %s24, 1
        %p445 = scmp.lt.s32.totalorder %s29, 1
        %s446 = scalar_select %p445, %s29, 1
        %s447 = smul.addr %s446, 8
        %s448 = scalar_lea.vmem %s0, %s447
        %p449 = pneg %p50
        %p450 = pneg %p47
        %p451 = pneg %p71
        %p452 = pneg %p68
        %p453 = pneg %p92
        %p454 = pneg %p89
        %p455 = pneg %p113
        %p456 = pneg %p110
        %p457 = pneg %p134
        %p458 = pneg %p131
        %p459 = pneg %p155
        %p460 = pneg %p152
        %p461 = pneg %p176
        %p462 = pneg %p173
        %p463 = pneg %p197
        %p464 = pneg %p194
        %p465 = pneg %p218
        %p466 = pneg %p215
        %p467 = pneg %p239
        %p468 = pneg %p236
        %p469 = pneg %p260
        %p470 = pneg %p257
        %p471 = pneg %p281
        %p472 = pneg %p278
        %p473 = pneg %p302
        %p474 = pneg %p299
        %p475 = pneg %p323
        %p476 = pneg %p320
        %p477 = pneg %p344
        %p478 = pneg %p341
        %p479 = pneg %p370
        %p480 = pneg %p367
        %s481 = sand.u32 %s357, 1
        %s482 = scalar_lea.sflag [#allocation9], %s481
        %s483 = sand.u32 %s357, 1
        %s484 = smul.addr %s483, 8
        %s485 = scalar_lea.vmem [#allocation8], %s484
        %p486 = scmp.lt.s32.totalorder %s29, 1
        %s487 = scalar_select %p486, %s29, 1
        %s488 = smul.addr %s487, 8
        %s489 = scalar_lea.vmem %s0, %s488
        %v490 = vld [vmem:[%s489] sm:$0xff]
        %v491 = vld [vmem:[%s1] sm:$0x1]
        %v492 = vld [vmem:[%s2] sm:$0x1]
        %vm493 = vcmask 261120
        %v494 = vsel %vm493, %v490, 0.0
        %495 = vadd.xlane.f32.xlu0 %v494
        %v496 = vpop.xlane.xlu0 %495
        %v497 = vrcp.pop 32.0
        %v498 = vmul.f32 32.0, %v497
        %v499 = vsub.f32 1.0, %v498
        %v500 = vmul.f32 %v497, %v499
        %v501 = vadd.f32 %v497, %v500
        %vm502 = vweird.f32 %v497
        %v503 = vsel %vm502, %v497, %v501
        %v504 = vmul.f32 %v496, %v503
        %v505 = vsub.f32 %v490, %v504
        %v506 = vmul.f32 %v505, %v505
        %v507 = vsel %vm493, %v506, 0.0
        %508 = vadd.xlane.f32.xlu0 %v507
        %v509 = vpop.xlane.xlu0 %508
        %v510 = vmul.f32 %v509, %v503
        %v511 = vadd.f32 %v510, 1e-05
        %v512 = vrsqrt.pop %v511
        %v513 = vmul.f32 %v512, %v511
        %v514 = vmul.f32 %v513, %v512
        %v515 = vmul.f32 0.5, %v514
        %v516 = vsub.f32 1.5, %v515
        %v517 = vmul.f32 %v512, %v516
        %vm518 = vweird.f32 %v511
        %vm519 = vweird.f32 %v512
        %vm520 = vmor %vm518, %vm519
        %v521 = vsel %vm520, %v512, %v517
        %v522 = vmul.f32 %v505, %v521
        %v524 = vperm.slane %v491, 0
        %v526 = vmul.f32 %v522, %v524
        %v528 = vperm.slane %v492, 0
        %v530 = vadd.f32 %v526, %v528
        %vm531 = vcmask 256000
        %532 = vst.msk [vmem:[#allocation2] sm:$0x7] %vm531, 0.0
        %533 = vst.msk [vmem:[#allocation2 + $0x3] sm:$0xff] %vm493, %v530
        %v534 = vld [vmem:[%s4] sm:$0x1]
        %v536 = vperm.slane %v534, 0
        %v538 = vld [vmem:[%s3] sm:$0x1]
        %v539 = vld [vmem:[#allocation2] sm:$0xff]
        %v540 = vperm.slane %v538, 0
        %v541 = vmul.f32 %v540, %v539
        %v542 = vadd.f32 %v536, %v541
        %v543 = vld [vmem:[%s3 + $0x1] sm:$0x1]
        %v544 = vld [vmem:[#allocation2 + $0x1] sm:$0xff]
        %v545 = vperm.slane %v543, 0
        %v546 = vmul.f32 %v545, %v544
        %v547 = vadd.f32 %v542, %v546
        %v548 = vld [vmem:[%s3 + $0x2] sm:$0x1]
        %v549 = vld [vmem:[#allocation2 + $0x2] sm:$0xff]
        %v550 = vperm.slane %v548, 0
        %v551 = vmul.f32 %v550, %v549
        %v552 = vadd.f32 %v547, %v551
        %v553 = vld [vmem:[%s3 + $0x3] sm:$0x1]
        %v554 = vld [vmem:[#allocation2 + $0x3] sm:$0xff]
        %v555 = vperm.slane %v553, 0
        %v556 = vmul.f32 %v555, %v554
        %v557 = vadd.f32 %v552, %v556
        %v558 = vsub.f32 0.0, %v557
        %v559 = vmul.f32 %v558, 1.442695
        %v560 = vpow.pop %v559
        %v561 = vadd.f32 %v560, 1.0
        %v562 = vrcp.pop %v561
        %v563 = vmul.f32 %v561, %v562
        %v564 = vsub.f32 1.0, %v563
        %v565 = vmul.f32 %v562, %v564
        %v566 = vadd.f32 %v562, %v565
        %vm567 = vweird.f32 %v561
        %vm568 = vweird.f32 %v562
        %vm569 = vmor %vm567, %vm568
        %v570 = vsel %vm569, %v562, %v566
        %v571 = vand.u32 2147483647, %v561
        %vm572 = vcmp.eq.f32.partialorder %v571, 8.507059e+37
        %v573 = vand.u32 %v561, 2147483648
        %v574 = vor.u32 1.1754944e-38, %v573
        %v575 = vsel %vm572, %v574, %v570
        %v576 = vmul.f32 1.0, %v575
        %v577 = vmul.f32 %v557, %v576
        %v578 = vld [vmem:[%s5] sm:$0xff]
        %v579 = vld [vmem:[%s5 + $0x8] sm:$0xff]
        %v580 = vld [vmem:[%s5 + $0x10] sm:$0xff]
        %v581 = vld [vmem:[%s5 + $0x18] sm:$0xff]
        %v583 = vsel %vm493, %v577, 0
        %585 = vmatpush.msra.mxu0 0.0
        %586 = vmatpush.msra.mxu0 0.0
        %587 = vmatpush.msra.mxu0 0.0
        %588 = vmatpush.msra.mxu0 0.0
        %589 = vmatpush.msra.mxu0 0.0
        %590 = vmatpush.msra.mxu0 0.0
        %591 = vmatpush.msra.mxu0 0.0
        %592 = vmatpush.msra.mxu0 0.0
        %593 = vmatpush.msra.mxu0 0.0
        %594 = vmatpush.msra.mxu0 0.0
        %595 = vmatpush.msra.mxu0 0.0
        %596 = vmatpush.msra.mxu0 0.0
        %597 = vmatpush.msra.mxu0 %v581
        %598 = vmatpush.msra.mxu0 %v580
        %599 = vmatpush.msra.mxu0 %v579
        %600 = vmatpush.msra.mxu0 %v578
        %601 = vmatmul.f32.gmra.mxu0 %v583
        %v602 = vpop.f32.mrf.mxu0
        %v603 = vadd.f32 0.0, %v602
        %604 = vdwg.mxu0
        %v605 = vld [vmem:[%s6] sm:$0x1]
        %v607 = vperm.slane %v605, 0
        %v609 = vadd.f32 %v603, %v607
        %v610 = vmax.f32 %v609, 0.0
        %v611 = vand.u32 2147483647, %v609
        %v612 = vsub.f32 0.0, %v611
        %v613 = vmul.f32 %v612, 1.442695
        %v614 = vpow.pop %v613
        %v615 = vadd.f32 %v614, 1.0
        %v616 = vlog2.pop %v615
        %v617 = vmul.f32 %v616, 0.6931472
        %v618 = vadd.f32 %v610, %v617
        %v619 = vld [vmem:[%s7] sm:$0xff]
        %v620 = vld [vmem:[%s7 + $0x8] sm:$0xff]
        %v621 = vmul.f32 %v619, 1.442695
        %v622 = vpow.pop %v621
        %v623 = vmul.f32 %v620, 1.442695
        %v624 = vpow.pop %v623
        %v625 = vsub.f32 0.0, %v622
        %v626 = vsub.f32 0.0, %v624
        %627 = vst.msk [vmem:[#allocation3] sm:$0xff] %vm493, %v618
        %v628 = vmul.f32 %v618, %v577
        %629 = vst.msk [vmem:[#allocation4] sm:$0xff] %vm493, %v628
        %631 = vrot.lane.b32.xlu0 %v603, 96
        %v632 = vpop.permute.xlu0 %631
        %vm634 = vcmask 130048
        %635 = vst.msk [vmem:[#allocation5] sm:$0xff] %vm634, %v632
        %636 = vrot.lane.b32.xlu0 %v603, 80
        %v637 = vpop.permute.xlu0 %636
        %639 = vst.msk [vmem:[#allocation6] sm:$0xff] %vm634, %v637
        %v640 = vlaneseq
        %v641 = vshrl.u32 %v640, 7
        %v642 = vadd.s32 %v641, 8
        %v643 = vlaneseq
        %v644 = vand.u32 %v643, 127
        %vm645 = vcmp.eq.s32.totalorder %v641, %v644
        %vm646 = vcmp.eq.s32.totalorder %v642, %v644
        loop: start=0, step=1, limit=8
        $region81: #{tpu_custom_call.1} parent=79 // loop_pre_header
          _
        $region82: #{tpu_custom_call.1} parent=79 // loop_header
          %s648 = sphi 0, %s652
          %p649 = scmp.ge.s32.totalorder %s648, 8
          %v653 = vphi 0.0, %v693
          %v654 = vphi 0.0, %v694
        $region83: #{tpu_custom_call.1} parent=79 // loop_header_branch
          %651 = sbr.rel (%p649) target = $region87
        $region84: #{tpu_custom_call.1} parent=79 // loop_body
          %s655 = scalar_lea.vmem [#allocation3], %s648
          %v656 = vld [vmem:[%s655] sm:$0x1]
          %s657 = scalar_lea.vmem [#allocation4], %s648
          %v658 = vld [vmem:[%s657] sm:$0x1]
          %s659 = scalar_lea.vmem [#allocation5], %s648
          %v660 = vld [vmem:[%s659] sm:$0x1]
          %v661 = vperm.slane %v660, 0
          %v662 = vsel %vm645, %v661, 0.0
          %v663 = vsel %vm646, %v661, 0.0
          %v664 = vsel %vm634, %v662, 0.0
          %665 = vadd.xlane.f32.xlu0 %v664
          %v666 = vpop.xlane.xlu0 %665
          %v667 = vsel %vm634, %v663, 0.0
          %668 = vadd.xlane.f32.xlu0 %v667
          %v669 = vpop.xlane.xlu0 %668
          %s670 = scalar_lea.vmem [#allocation6], %s648
          %v671 = vld [vmem:[%s670] sm:$0x1]
          %v672 = vperm.slane %v671, 0
          %v673 = vsel %vm645, %v672, 0.0
          %v674 = vsel %vm646, %v672, 0.0
          %v675 = vsel %vm634, %v673, 0.0
          %676 = vadd.xlane.f32.xlu0 %v675
          %v677 = vpop.xlane.xlu0 %676
          %v678 = vsel %vm634, %v674, 0.0
          %679 = vadd.xlane.f32.xlu0 %v678
          %v680 = vpop.xlane.xlu0 %679
          %v681 = vperm.slane %v656, 0
          %v682 = vmul.f32 %v681, %v625
          %v683 = vmul.f32 %v681, %v626
          %v684 = vmul.f32 %v682, 1.442695
          %v685 = vpow.pop %v684
          %v686 = vmul.f32 %v683, 1.442695
          %v687 = vpow.pop %v686
          %v688 = vperm.slane %v658, 0
          %v689 = vmul.f32 %v666, %v688
          %v690 = vmul.f32 %v669, %v688
          %v691 = vmul.f32 %v685, %v653
          %v692 = vmul.f32 %v687, %v654
          %v693 = vadd.f32 %v691, %v689
          %v694 = vadd.f32 %v692, %v690
          %v695 = vmul.f32 %v677, %v693
          %v696 = vmul.f32 %v680, %v694
          %v697 = vsel %vm493, %v695, 0.0
          %v698 = vsel %vm493, %v696, 0.0
          %v699 = vadd.f32 %v697, %v698
          %v700 = vrot.slane %v699, 4
          %v701 = vadd.f32 %v699, %v700
          %v702 = vrot.slane %v701, 2
          %v703 = vadd.f32 %v701, %v702
          %v704 = vrot.slane %v703, 1
          %v705 = vadd.f32 %v703, %v704
          %s706 = scalar_lea.vmem [#allocation7], %s648
          %vm707 = vcmask 253952
          %708 = vst.msk [vmem:[%s706] sm:$0x1] %vm707, %v705
        $region85: #{tpu_custom_call.1} parent=79 // loop_footer
          %s652 = sadd.s32 1, %s648
        $region86: #{tpu_custom_call.1} parent=79 // loop_footer_branch
          %647 = sbr.rel target = $region82
        $region87: #{tpu_custom_call.1} parent=79 // loop_exit
          _
        %v709 = vld [vmem:[#allocation7] sm:$0xff]
        %v710 = vld [vmem:[%s8] sm:$0x1]
        %v712 = vperm.slane %v710, 0
        %v714 = vmul.f32 %v577, %v712
        %v715 = vadd.f32 %v709, %v714
        %v716 = vadd.f32 %v490, %v715
        %v717 = vld [vmem:[%s9] sm:$0x1]
        %v718 = vld [vmem:[%s10] sm:$0x1]
        %v719 = vsel %vm493, %v716, 0.0
        %720 = vadd.xlane.f32.xlu0 %v719
        %v721 = vpop.xlane.xlu0 %720
        %v722 = vmul.f32 %v721, %v503
        %v723 = vsub.f32 %v716, %v722
        %v724 = vmul.f32 %v723, %v723
        %v725 = vsel %vm493, %v724, 0.0
        %726 = vadd.xlane.f32.xlu0 %v725
        %v727 = vpop.xlane.xlu0 %726
        %v728 = vmul.f32 %v727, %v503
        %v729 = vadd.f32 %v728, 1e-05
        %v730 = vrsqrt.pop %v729
        %v731 = vmul.f32 %v730, %v729
        %v732 = vmul.f32 %v731, %v730
        %v733 = vmul.f32 0.5, %v732
        %v734 = vsub.f32 1.5, %v733
        %v735 = vmul.f32 %v730, %v734
        %vm736 = vweird.f32 %v729
        %vm737 = vweird.f32 %v730
        %vm738 = vmor %vm736, %vm737
        %v739 = vsel %vm738, %v730, %v735
        %v740 = vmul.f32 %v723, %v739
        %v742 = vperm.slane %v717, 0
        %v744 = vmul.f32 %v740, %v742
        %v746 = vperm.slane %v718, 0
        %v748 = vadd.f32 %v744, %v746
        %v749 = vld [vmem:[%s11] sm:$0xff]
        %v750 = vld [vmem:[%s11 + $0x8] sm:$0xff]
        %v751 = vld [vmem:[%s11 + $0x10] sm:$0xff]
        %v752 = vld [vmem:[%s11 + $0x18] sm:$0xff]
        %v753 = vld [vmem:[%s12] sm:$0x1]
        %v755 = vperm.slane %v753, 0
        %v758 = vsel %vm493, %v748, 0
        %760 = vmatpush.msra.mxu0 0.0
        %761 = vmatpush.msra.mxu0 0.0
        %762 = vmatpush.msra.mxu0 0.0
        %763 = vmatpush.msra.mxu0 0.0
        %764 = vmatpush.msra.mxu0 0.0
        %765 = vmatpush.msra.mxu0 0.0
        %766 = vmatpush.msra.mxu0 0.0
        %767 = vmatpush.msra.mxu0 0.0
        %768 = vmatpush.msra.mxu0 0.0
        %769 = vmatpush.msra.mxu0 0.0
        %770 = vmatpush.msra.mxu0 0.0
        %771 = vmatpush.msra.mxu0 0.0
        %772 = vmatpush.msra.mxu0 %v752
        %773 = vmatpush.msra.mxu0 %v751
        %774 = vmatpush.msra.mxu0 %v750
        %775 = vmatpush.msra.mxu0 %v749
        %776 = vmatmul.f32.gmra.mxu0 %v758
        %v777 = vpop.f32.mrf.mxu0
        %v778 = vadd.f32 %v755, %v777
        %779 = vdwg.mxu0
        %v780 = vmul.f32 %v778, 0.5
        %v781 = vmul.f32 %v778, 0.044715
        %v782 = vmul.f32 %v781, %v778
        %v783 = vmul.f32 %v782, %v778
        %v784 = vadd.f32 %v778, %v783
        %v785 = vmul.f32 %v784, 0.7978846
        %v786 = vtanh.pop %v785
        %v787 = vadd.f32 %v786, 1.0
        %v788 = vmul.f32 %v780, %v787
        %v789 = vld [vmem:[%s13] sm:$0xff]
        %v790 = vld [vmem:[%s13 + $0x8] sm:$0xff]
        %v791 = vld [vmem:[%s13 + $0x10] sm:$0xff]
        %v792 = vld [vmem:[%s13 + $0x18] sm:$0xff]
        %v793 = vld [vmem:[%s13 + $0x20] sm:$0xff]
        %v794 = vld [vmem:[%s13 + $0x28] sm:$0xff]
        %v795 = vld [vmem:[%s13 + $0x30] sm:$0xff]
        %v796 = vld [vmem:[%s13 + $0x38] sm:$0xff]
        %v797 = vld [vmem:[%s13 + $0x40] sm:$0xff]
        %v798 = vld [vmem:[%s13 + $0x48] sm:$0xff]
        %v799 = vld [vmem:[%s13 + $0x50] sm:$0xff]
        %v800 = vld [vmem:[%s13 + $0x58] sm:$0xff]
        %v801 = vld [vmem:[%s13 + $0x60] sm:$0xff]
        %v802 = vld [vmem:[%s13 + $0x68] sm:$0xff]
        %v803 = vld [vmem:[%s13 + $0x70] sm:$0xff]
        %v804 = vld [vmem:[%s13 + $0x78] sm:$0xff]
        %v805 = vld [vmem:[%s14] sm:$0x1]
        %v807 = vperm.slane %v805, 0
        %809 = vmatpush.msra.mxu0 %v804
        %810 = vmatpush.msra.mxu0 %v803
        %811 = vmatpush.msra.mxu0 %v802
        %812 = vmatpush.msra.mxu0 %v801
        %813 = vmatpush.msra.mxu0 %v800
        %814 = vmatpush.msra.mxu0 %v799
        %815 = vmatpush.msra.mxu0 %v798
        %816 = vmatpush.msra.mxu0 %v797
        %817 = vmatpush.msra.mxu0 %v796
        %818 = vmatpush.msra.mxu0 %v795
        %819 = vmatpush.msra.mxu0 %v794
        %820 = vmatpush.msra.mxu0 %v793
        %821 = vmatpush.msra.mxu0 %v792
        %822 = vmatpush.msra.mxu0 %v791
        %823 = vmatpush.msra.mxu0 %v790
        %824 = vmatpush.msra.mxu0 %v789
        %825 = vmatmul.f32.gmra.mxu0 %v788
        %v826 = vpop.f32.mrf.mxu0
        %v827 = vadd.f32 %v807, %v826
        %828 = vdwg.mxu0
        %v829 = vadd.f32 %v716, %v827
        %830 = vst.msk [vmem:[%s485] sm:$0xff] %vm493, %v829
        %s831 = sand.u32 %s357, 1
        %s832 = scalar_lea.sflag [#allocation9], %s831
        %s833 = sand.u32 %s357, 1
        %s834 = smul.addr %s833, 8
        %s835 = scalar_lea.vmem [#allocation8], %s834
        // Predicated region
        $region88: #{tpu_custom_call.1} parent=79 // pred_check
          %p836 = pneg %p367
        $region89: #{tpu_custom_call.1} parent=79 // pred_check_branch
          %838 = sbr.rel (%p836) target = $region91
        $region90: #{tpu_custom_call.1} parent=79 // pred_region
          %840 = vsyncadd %s832, 0
          %s841 = smul.addr %s29, 8
          %s842 = scalar_lea.hbm %s15, %s841
          %s844 = sshll.u32 %s835, 4
          %s845 = int_to_ptr.vmem [resolvable:$true] %s844
          %s846 = sshll.u32 %s842, 4
          %s847 = int_to_ptr.hbm [resolvable:$true] %s846
          %849 = dma.vmem_to_hbm [thread:$0]  %s845, 128, %s847, %s832
        $region91: #{tpu_custom_call.1} parent=79 // pred_fallthru
          _
      $region80: #{tpu_custom_call.1} parent=5 // pred_fallthru
        _
      %p850 = scmp.le.s32.totalorder 2, %s24
      // Predicated region
      $region92: #{tpu_custom_call.1} parent=5 // pred_check
        %p851 = pneg %p850
      $region93: #{tpu_custom_call.1} parent=5 // pred_check_branch
        %853 = sbr.rel (%p851) target = $region95
      $region94: #{tpu_custom_call.1} parent=5 // pred_region
        %s854 = ssub.s32 %s24, 2
        // Predicated region
        $region96: #{tpu_custom_call.1} parent=94 // pred_check
          %p855 = pneg %p373
        $region97: #{tpu_custom_call.1} parent=94 // pred_check_branch
          %857 = sbr.rel (%p855) target = $region99
        $region98: #{tpu_custom_call.1} parent=94 // pred_region
          %s858 = sand.u32 %s358, 1
          %s859 = scalar_lea.sflag [#allocation9], %s858
          %s860 = sand.u32 %s358, 1
          %s861 = smul.addr %s860, 8
          %s862 = scalar_lea.vmem [#allocation8], %s861
          %864 = dma.done %s859, 128
        $region99: #{tpu_custom_call.1} parent=94 // pred_fallthru
          _
      $region95: #{tpu_custom_call.1} parent=5 // pred_fallthru
        _
    $region6: #{tpu_custom_call.1} parent=1 // loop_footer
      %s28 = sadd.s32 1, %s24
    $region7: #{tpu_custom_call.1} parent=1 // loop_footer_branch
      %23 = sbr.rel target = $region3
    $region8: #{tpu_custom_call.1} parent=1 // loop_exit
      _
    %865 = vsyncpa [#allocation9], 1
    %s866 = scalar_lea.sflag [#allocation9], 1
    %867 = vsyncpa %s866, 1

</llo_original>
